<compile_context>
chip_gen: v5e
topology: v5e:2x2
jax: 0.10.0
libtpu: 0.0.40
codegen_flags: <defaults>
</compile_context>

<pallas_src>
import jax
import jax.numpy as jnp
from jax.experimental import pallas as pl
from jax.experimental.pallas import tpu as pltpu


def ngram_kernel(ids_ref, m_ref, b1_ref, w2_ref, b2_ref, out_ref):
    # ids_ref: (TB, C)    int32 -- token ids for TB contexts (tiled over batch)
    # m_ref  : (C*V, H)   bf16  -- embedding table folded into linear1
    # b1_ref : (1, H)     f32
    # w2_ref : (H, V)     bf16
    # b2_ref : (1, V)     f32
    # out_ref: (TB, V)          -- log-probs
    tb, c_size = ids_ref.shape
    vocab = w2_ref.shape[1]

    ids = ids_ref[...]                                              # (TB, C) i32
    iota_v = jax.lax.broadcasted_iota(jnp.int32, (tb, vocab), 1)

    # Concatenated one-hot: row r has a 1 at column c*V + ids[r, c] for every
    # context position c.  Built as C (TB, V) compares, one bf16 cast each,
    # then a single lane-concat to (TB, C*V).
    parts = [(iota_v == ids[:, c:c + 1]).astype(m_ref.dtype)
             for c in range(c_size)]                                # static unroll
    one_hot = jnp.concatenate(parts, axis=1)                        # (TB, C*V) bf16

    # Fused embedding gather + linear1: one full-width MXU matmul
    # (TB, C*V) @ (C*V, H) with f32 accumulation (exact: one-hot is 0/1).
    h = jnp.dot(one_hot, m_ref[...], preferred_element_type=jnp.float32)
    h = jnp.maximum(h + b1_ref[...], 0.0)                           # bias + ReLU (f32)

    # linear2 (bf16 weights, f32 accumulation)
    logits = jnp.dot(h.astype(w2_ref.dtype), w2_ref[...],
                     preferred_element_type=jnp.float32) + b2_ref[...]  # (TB, V)

    # numerically stable log_softmax along dim=1, all in f32
    mx = jnp.max(logits, axis=-1, keepdims=True)
    shifted = logits - mx
    lse = jnp.log(jnp.sum(jnp.exp(shifted), axis=-1, keepdims=True))
    out_ref[...] = (shifted - lse).astype(out_ref.dtype)


def ngram_forward(token_ids, emb_table, w1_t, b1, w2_t, b2, *, tb=None,
                  out_dtype=jnp.float32):
    """Batched forward.

    token_ids: (B, context) int32.  Returns (B, vocab) log-probs (out_dtype);
    each row equals NGramLanguageModeler.forward applied to that context.
    Pass out_dtype=jnp.bfloat16 to halve the output HBM writeback.
    """
    batch, c_size = token_ids.shape
    vocab, emb_dim = emb_table.shape
    hidden = w1_t.shape[1]
    assert w1_t.shape[0] == c_size * emb_dim
    assert w2_t.shape == (hidden, vocab)

    # Fold the embedding table into linear1 (f32 precompute, one bf16 cast).
    emb_f32 = emb_table.astype(jnp.float32)
    w1_f32 = w1_t.astype(jnp.float32)
    m_folded = jnp.concatenate(
        [emb_f32 @ w1_f32[c * emb_dim:(c + 1) * emb_dim, :]
         for c in range(c_size)], axis=0).astype(jnp.bfloat16)      # (C*V, H)

    # Batch tile: large enough to amortize per-step overhead; keep >= 2 grid
    # steps when possible so v7x megacore gets both TensorCores busy.
    if tb is None:
        if batch >= 1024:
            tb = 512
        else:
            tb = max(8, pl.cdiv(pl.cdiv(batch, 2), 8) * 8)
    b_pad = pl.cdiv(batch, tb) * tb
    if b_pad != batch:
        token_ids = jnp.pad(token_ids, ((0, b_pad - batch), (0, 0)))

    out = pl.pallas_call(
        ngram_kernel,
        out_shape=jax.ShapeDtypeStruct((b_pad, vocab), out_dtype),
        grid=(b_pad // tb,),
        in_specs=[
            pl.BlockSpec((tb, c_size), lambda i: (i, 0)),              # ids (tiled)
            pl.BlockSpec((c_size * vocab, hidden), lambda i: (0, 0)),  # folded emb+W1
            pl.BlockSpec((1, hidden), lambda i: (0, 0)),               # b1
            pl.BlockSpec((hidden, vocab), lambda i: (0, 0)),           # W2
            pl.BlockSpec((1, vocab), lambda i: (0, 0)),                # b2
        ],
        out_specs=pl.BlockSpec((tb, vocab), lambda i: (i, 0)),
        compiler_params=pltpu.CompilerParams(
            dimension_semantics=("parallel",)),                        # megacore on v7x
    )(token_ids, m_folded, b1, w2_t, b2)
    return out[:batch]


if __name__ == "__main__":
    # Small, TPU-friendly shapes consistent with the module's __init__.
    vocab_size = 256
    embedding_dim = 64
    context_size = 2
    hidden = 128          # fixed at 128 in the PyTorch module
    batch = 512           # wrapper auto-picks tb=256 -> grid=(2,) (both TCs on v7x)

    key = jax.random.PRNGKey(0)
    k_emb, k_w1, k_b1, k_w2, k_b2, k_in = jax.random.split(key, 6)

    # bf16 weights (halve weight DMA), f32 biases.
    emb_table = (jax.random.normal(k_emb, (vocab_size, embedding_dim), jnp.float32)
                 * 0.1).astype(jnp.bfloat16)
    # PyTorch Linear stores weight as (out, in); we keep (in, out) for x @ W.
    w1_t = (jax.random.normal(k_w1, (context_size * embedding_dim, hidden), jnp.float32)
            * 0.05).astype(jnp.bfloat16)
    b1 = jax.random.normal(k_b1, (1, hidden), jnp.float32) * 0.01
    w2_t = (jax.random.normal(k_w2, (hidden, vocab_size), jnp.float32)
            * 0.05).astype(jnp.bfloat16)
    b2 = jax.random.normal(k_b2, (1, vocab_size), jnp.float32) * 0.01

    token_ids = jax.random.randint(k_in, (batch, context_size), 0, vocab_size, jnp.int32)

    log_probs = ngram_forward(token_ids, emb_table, w1_t, b1, w2_t, b2)
    log_probs = jax.block_until_ready(log_probs)

    # Pure-JAX reference mirroring the kernel's precision choices (folded
    # bf16 emb+W1, f32 accumulation, h cast to bf16 before linear2).
    emb_f32 = emb_table.astype(jnp.float32)
    w1_f32 = w1_t.astype(jnp.float32)
    w2_f32 = w2_t.astype(jnp.float32)
    m_f32 = jnp.concatenate(
        [emb_f32 @ w1_f32[c * embedding_dim:(c + 1) * embedding_dim, :]
         for c in range(context_size)], axis=0
    ).astype(jnp.bfloat16).astype(jnp.float32)                       # (C*V, H)
    idx = token_ids + jnp.arange(context_size, dtype=jnp.int32)[None, :] * vocab_size
    h_ref = jnp.take(m_f32, idx, axis=0).sum(axis=1) + b1            # (B, H)
    h_ref = jnp.maximum(h_ref, 0.0)
    logits_ref = h_ref.astype(jnp.bfloat16).astype(jnp.float32) @ w2_f32 + b2
    ref = jax.nn.log_softmax(logits_ref, axis=-1)

    assert log_probs.shape == (batch, vocab_size)
    max_err = float(jnp.max(jnp.abs(log_probs - ref)))
    assert jnp.allclose(log_probs, ref, atol=1e-3, rtol=1e-3), max_err

    print("KERNEL_OK")
</pallas_src>

<mosaic_0001>
module attributes {stable_mosaic.version = 11 : i64} {
  func.func @ngram_kernel(%arg0: i32, %arg1: memref<256x2xi32, #tpu.memory_space<vmem>>, %arg2: memref<512x128xbf16, #tpu.memory_space<vmem>>, %arg3: memref<1x128xf32, #tpu.memory_space<vmem>>, %arg4: memref<128x256xbf16, #tpu.memory_space<vmem>>, %arg5: memref<1x256xf32, #tpu.memory_space<vmem>>, %arg6: memref<256x256xf32, #tpu.memory_space<vmem>>) attributes {dimension_semantics = [#tpu.dimension_semantics<parallel>], iteration_bounds = array<i64: 2>, scalar_prefetch = 0 : i64, scratch_operands = 0 : i64, tpu.core_type = #tpu.core_type<tc>, window_params = [{transform_indices = @transform_0, window_bounds = array<i64: 256, 2>}, {pipeline_mode = #tpu.pipeline_mode<synchronous>, transform_indices = @transform_1, window_bounds = array<i64: 512, 128>}, {pipeline_mode = #tpu.pipeline_mode<synchronous>, transform_indices = @transform_2, window_bounds = array<i64: 1, 128>}, {pipeline_mode = #tpu.pipeline_mode<synchronous>, transform_indices = @transform_3, window_bounds = array<i64: 128, 256>}, {pipeline_mode = #tpu.pipeline_mode<synchronous>, transform_indices = @transform_4, window_bounds = array<i64: 1, 256>}, {transform_indices = @transform_5, window_bounds = array<i64: 256, 256>}]} {
    %c0 = arith.constant 0 : index
    %c0_0 = arith.constant 0 : index
    %0 = vector.load %arg1[%c0, %c0_0] : memref<256x2xi32, #tpu.memory_space<vmem>>, vector<256x2xi32>
    %1 = tpu.iota {dimensions = array<i32: 1>} : vector<256x256xi32>
    %2 = vector.extract_strided_slice %0 {offsets = [0, 0], sizes = [256, 1], strides = [1, 1]} : vector<256x2xi32> to vector<256x1xi32>
    %3 = vector.broadcast %2 : vector<256x1xi32> to vector<256x256xi32>
    %4 = arith.cmpi eq, %1, %3 : vector<256x256xi32>
    %5 = arith.extui %4 : vector<256x256xi1> to vector<256x256xi32>
    %6 = arith.sitofp %5 : vector<256x256xi32> to vector<256x256xf32>
    %7 = arith.truncf %6 : vector<256x256xf32> to vector<256x256xbf16>
    %8 = vector.extract_strided_slice %0 {offsets = [0, 1], sizes = [256, 1], strides = [1, 1]} : vector<256x2xi32> to vector<256x1xi32>
    %9 = vector.broadcast %8 : vector<256x1xi32> to vector<256x256xi32>
    %10 = arith.cmpi eq, %1, %9 : vector<256x256xi32>
    %11 = arith.extui %10 : vector<256x256xi1> to vector<256x256xi32>
    %12 = arith.sitofp %11 : vector<256x256xi32> to vector<256x256xf32>
    %13 = arith.truncf %12 : vector<256x256xf32> to vector<256x256xbf16>
    %14 = tpu.concatenate %7, %13 in 1 : vector<256x256xbf16>, vector<256x256xbf16> -> vector<256x512xbf16>
    %c0_1 = arith.constant 0 : index
    %c0_2 = arith.constant 0 : index
    %15 = vector.load %arg2[%c0_1, %c0_2] : memref<512x128xbf16, #tpu.memory_space<vmem>>, vector<512x128xbf16>
    %cst = arith.constant dense<0.000000e+00> : vector<256x128xf32>
    %16 = tpu.matmul %14, %15, %cst {dimension_numbers = #tpu.dot_dimension_numbers<[1], [0], [0], [1], [0, 0, 1, 1], [], []>} : vector<256x512xbf16>, vector<512x128xbf16>, vector<256x128xf32> -> vector<256x128xf32>
    %c0_3 = arith.constant 0 : index
    %c0_4 = arith.constant 0 : index
    %17 = vector.load %arg3[%c0_3, %c0_4] : memref<1x128xf32, #tpu.memory_space<vmem>>, vector<1x128xf32>
    %18 = vector.broadcast %17 : vector<1x128xf32> to vector<256x128xf32>
    %19 = arith.addf %16, %18 : vector<256x128xf32>
    %cst_5 = arith.constant 0.000000e+00 : f32
    %20 = vector.broadcast %cst_5 : f32 to vector<256x128xf32>
    %21 = arith.maximumf %19, %20 : vector<256x128xf32>
    %22 = arith.truncf %21 : vector<256x128xf32> to vector<256x128xbf16>
    %c0_6 = arith.constant 0 : index
    %c0_7 = arith.constant 0 : index
    %23 = vector.load %arg4[%c0_6, %c0_7] : memref<128x256xbf16, #tpu.memory_space<vmem>>, vector<128x256xbf16>
    %cst_8 = arith.constant dense<0.000000e+00> : vector<256x256xf32>
    %24 = tpu.matmul %22, %23, %cst_8 {dimension_numbers = #tpu.dot_dimension_numbers<[1], [0], [0], [1], [0, 0, 1, 1], [], []>} : vector<256x128xbf16>, vector<128x256xbf16>, vector<256x256xf32> -> vector<256x256xf32>
    %c0_9 = arith.constant 0 : index
    %c0_10 = arith.constant 0 : index
    %25 = vector.load %arg5[%c0_9, %c0_10] : memref<1x256xf32, #tpu.memory_space<vmem>>, vector<1x256xf32>
    %26 = vector.broadcast %25 : vector<1x256xf32> to vector<256x256xf32>
    %27 = arith.addf %24, %26 : vector<256x256xf32>
    %cst_11 = arith.constant dense<0xFF800000> : vector<256xf32>
    %28 = vector.multi_reduction <maximumf>, %27, %cst_11 [1] : vector<256x256xf32> to vector<256xf32>
    %29 = vector.shape_cast %28 : vector<256xf32> to vector<256x1xf32>
    %30 = vector.broadcast %29 : vector<256x1xf32> to vector<256x256xf32>
    %31 = arith.subf %27, %30 : vector<256x256xf32>
    %32 = math.exp %31 : vector<256x256xf32>
    %cst_12 = arith.constant dense<0.000000e+00> : vector<256xf32>
    %33 = vector.multi_reduction <add>, %32, %cst_12 [1] : vector<256x256xf32> to vector<256xf32>
    %34 = vector.shape_cast %33 : vector<256xf32> to vector<256x1xf32>
    %35 = math.log %34 : vector<256x1xf32>
    %36 = vector.broadcast %35 : vector<256x1xf32> to vector<256x256xf32>
    %37 = arith.subf %31, %36 : vector<256x256xf32>
    %c0_13 = arith.constant 0 : index
    %c0_14 = arith.constant 0 : index
    %38 = vector.load %arg6[%c0_13, %c0_14] : memref<256x256xf32, #tpu.memory_space<vmem>>, vector<256x256xf32>
    tpu.vector_store %arg6[%c0_13, %c0_14], %37 {strides = array<i32>} : memref<256x256xf32, #tpu.memory_space<vmem>>, vector<256x256xf32>,
    return
  }
  func.func @transform_0(%arg0: i32) -> (i32, i32) {
    %c0_i32 = arith.constant 0 : i32
    %c0_i32_0 = arith.constant 0 : i32
    return %arg0, %c0_i32 : i32, i32
  }
  func.func @transform_1(%arg0: i32) -> (i32, i32) {
    %c0_i32 = arith.constant 0 : i32
    %c0_i32_0 = arith.constant 0 : i32
    %c0_i32_1 = arith.constant 0 : i32
    return %c0_i32, %c0_i32_0 : i32, i32
  }
  func.func @transform_2(%arg0: i32) -> (i32, i32) {
    %c0_i32 = arith.constant 0 : i32
    %c0_i32_0 = arith.constant 0 : i32
    %c0_i32_1 = arith.constant 0 : i32
    return %c0_i32, %c0_i32_0 : i32, i32
  }
  func.func @transform_3(%arg0: i32) -> (i32, i32) {
    %c0_i32 = arith.constant 0 : i32
    %c0_i32_0 = arith.constant 0 : i32
    %c0_i32_1 = arith.constant 0 : i32
    return %c0_i32, %c0_i32_0 : i32, i32
  }
  func.func @transform_4(%arg0: i32) -> (i32, i32) {
    %c0_i32 = arith.constant 0 : i32
    %c0_i32_0 = arith.constant 0 : i32
    %c0_i32_1 = arith.constant 0 : i32
    return %c0_i32, %c0_i32_0 : i32, i32
  }
  func.func @transform_5(%arg0: i32) -> (i32, i32) {
    %c0_i32 = arith.constant 0 : i32
    %c0_i32_0 = arith.constant 0 : i32
    return %arg0, %c0_i32 : i32, i32
  }
}

</mosaic_0001>

<llo_original>
// kernel: tpu_custom_call.1
$region0: #{tpu_custom_call.1}
  #allocation0 [shape = 'u32[]', space=smem, size = 0x4, offset = 0x4, fixed_abs, tag = 'smem constant byte address 0x4 - core index']
  #allocation1 [shape = 'u32[72,128]{1,0:T(1,128)}', space=vmem, size = 0x9000, scoped, tag = 'internal scratch']
  %s0 = inlined_call_operand.vmem [shape: s32[512,2], index: 0, kind: input, shape index: {}]
  %s1 = inlined_call_operand.vmem [shape: bf16[512,128], index: 1, kind: input, shape index: {}]
  %s2 = inlined_call_operand.vmem [shape: f32[1,128], index: 2, kind: input, shape index: {}]
  %s3 = inlined_call_operand.vmem [shape: bf16[128,256], index: 3, kind: input, shape index: {}]
  %s4 = inlined_call_operand.vmem [shape: f32[1,256], index: 4, kind: input, shape index: {}]
  %s5 = inlined_call_operand.hbm [shape: f32[512,256], index: 5, kind: output, shape index: {}]
  %s6 = sld [smem:[#allocation0]]
  $region53: #{tpu_custom_call.1} parent=0
    _
  %s8 = ssub.s32 1, %s6
  %s9 = scalar_select 0, %s8, %s6
  $region1: #{tpu_custom_call.1} parent=0
    #allocation2 [shape = 'u8[524288]{0}', space=vmem, size = 0x80000, scoped, tag = 'output window, operand 0']
    #allocation3 [shape = 's32[2]{0}', space=sflag, size = 0x8, scoped, tag = 'scoped memory for tpu_custom_call.1']
    %10 = vsyncpa [#allocation3], 0
    %s11 = scalar_lea.sflag [#allocation3], 1
    %12 = vsyncpa %s11, 0
    loop: start=0, step=1, limit=4
    $region2: #{tpu_custom_call.1} parent=1 // loop_pre_header
      _
    $region3: #{tpu_custom_call.1} parent=1 // loop_header
      %s14 = sphi 0, %s18
      %p15 = scmp.ge.s32.totalorder %s14, 4
      %s24 = sphi 0, %s26
      %s27 = sphi 0, %s24
      %s28 = sphi 0, %s27
      %s44 = sphi 0, %s28
      %s48 = sphi 0, %s48
      %s50 = sphi 0, %s48
      %s51 = sphi 0, %s50
      %s65 = sphi 0, %s51
      %s69 = sphi 0, %s69
      %s71 = sphi 0, %s69
      %s72 = sphi 0, %s71
      %s86 = sphi 0, %s72
      %s90 = sphi 0, %s90
      %s92 = sphi 0, %s90
      %s93 = sphi 0, %s92
      %s107 = sphi 0, %s93
      %s111 = sphi 0, %s111
      %s113 = sphi 0, %s111
      %s114 = sphi 0, %s113
      %s128 = sphi 0, %s114
      %s134 = sphi 0, %s136
      %s137 = sphi 0, %s134
      %s138 = sphi 0, %s137
      %s154 = sphi 0, %s138
    $region4: #{tpu_custom_call.1} parent=1 // loop_header_branch
      %17 = sbr.rel (%p15) target = $region8
    $region5: #{tpu_custom_call.1} parent=1 // loop_body
      %s19 = ssub.s32 %s14, 1
      %s20 = ssub.s32 %s14, 2
      %s21 = sadd.s32 %s14, 1
      %s22 = ssub.s32 %s14, %s21
      %p23 = scmp.eq.s32.totalorder %s22, 0
      %s25 = sadd.s32 %s24, 1
      %s26 = scalar_select %p23, %s24, %s25
      %p29 = pneg %p23
      %p30 = scmp.eq.s32.totalorder %s14, 1
      %p31 = por %p29, %p30
      %p32 = scmp.ne.s32.totalorder %s24, %s27
      %p33 = scmp.eq.s32.totalorder %s14, 0
      %p34 = por %p32, %p33
      %p35 = scmp.ne.s32.totalorder %s24, %s27
      %p36 = scmp.eq.s32.totalorder %s19, 1
      %p37 = por %p35, %p36
      %p38 = scmp.ne.s32.totalorder %s27, %s28
      %p39 = scmp.eq.s32.totalorder %s19, 0
      %p40 = por %p38, %p39
      %p41 = scmp.ne.s32.totalorder %s27, %s28
      %p42 = scmp.eq.s32.totalorder %s20, 1
      %p43 = por %p41, %p42
      %p45 = scmp.ne.s32.totalorder %s28, %s44
      %p46 = scmp.eq.s32.totalorder %s20, 0
      %p47 = por %p45, %p46
      %s49 = sadd.s32 %s48, 1
      %p52 = scmp.eq.s32.totalorder %s14, 1
      %p53 = scmp.ne.s32.totalorder %s48, %s50
      %p54 = scmp.eq.s32.totalorder %s14, 0
      %p55 = por %p53, %p54
      %p56 = scmp.ne.s32.totalorder %s48, %s50
      %p57 = scmp.eq.s32.totalorder %s19, 1
      %p58 = por %p56, %p57
      %p59 = scmp.ne.s32.totalorder %s50, %s51
      %p60 = scmp.eq.s32.totalorder %s19, 0
      %p61 = por %p59, %p60
      %p62 = scmp.ne.s32.totalorder %s50, %s51
      %p63 = scmp.eq.s32.totalorder %s20, 1
      %p64 = por %p62, %p63
      %p66 = scmp.ne.s32.totalorder %s51, %s65
      %p67 = scmp.eq.s32.totalorder %s20, 0
      %p68 = por %p66, %p67
      %s70 = sadd.s32 %s69, 1
      %p73 = scmp.eq.s32.totalorder %s14, 1
      %p74 = scmp.ne.s32.totalorder %s69, %s71
      %p75 = scmp.eq.s32.totalorder %s14, 0
      %p76 = por %p74, %p75
      %p77 = scmp.ne.s32.totalorder %s69, %s71
      %p78 = scmp.eq.s32.totalorder %s19, 1
      %p79 = por %p77, %p78
      %p80 = scmp.ne.s32.totalorder %s71, %s72
      %p81 = scmp.eq.s32.totalorder %s19, 0
      %p82 = por %p80, %p81
      %p83 = scmp.ne.s32.totalorder %s71, %s72
      %p84 = scmp.eq.s32.totalorder %s20, 1
      %p85 = por %p83, %p84
      %p87 = scmp.ne.s32.totalorder %s72, %s86
      %p88 = scmp.eq.s32.totalorder %s20, 0
      %p89 = por %p87, %p88
      %s91 = sadd.s32 %s90, 1
      %p94 = scmp.eq.s32.totalorder %s14, 1
      %p95 = scmp.ne.s32.totalorder %s90, %s92
      %p96 = scmp.eq.s32.totalorder %s14, 0
      %p97 = por %p95, %p96
      %p98 = scmp.ne.s32.totalorder %s90, %s92
      %p99 = scmp.eq.s32.totalorder %s19, 1
      %p100 = por %p98, %p99
      %p101 = scmp.ne.s32.totalorder %s92, %s93
      %p102 = scmp.eq.s32.totalorder %s19, 0
      %p103 = por %p101, %p102
      %p104 = scmp.ne.s32.totalorder %s92, %s93
      %p105 = scmp.eq.s32.totalorder %s20, 1
      %p106 = por %p104, %p105
      %p108 = scmp.ne.s32.totalorder %s93, %s107
      %p109 = scmp.eq.s32.totalorder %s20, 0
      %p110 = por %p108, %p109
      %s112 = sadd.s32 %s111, 1
      %p115 = scmp.eq.s32.totalorder %s14, 1
      %p116 = scmp.ne.s32.totalorder %s111, %s113
      %p117 = scmp.eq.s32.totalorder %s14, 0
      %p118 = por %p116, %p117
      %p119 = scmp.ne.s32.totalorder %s111, %s113
      %p120 = scmp.eq.s32.totalorder %s19, 1
      %p121 = por %p119, %p120
      %p122 = scmp.ne.s32.totalorder %s113, %s114
      %p123 = scmp.eq.s32.totalorder %s19, 0
      %p124 = por %p122, %p123
      %p125 = scmp.ne.s32.totalorder %s113, %s114
      %p126 = scmp.eq.s32.totalorder %s20, 1
      %p127 = por %p125, %p126
      %p129 = scmp.ne.s32.totalorder %s114, %s128
      %p130 = scmp.eq.s32.totalorder %s20, 0
      %p131 = por %p129, %p130
      %s132 = ssub.s32 %s14, %s21
      %p133 = scmp.eq.s32.totalorder %s132, 0
      %s135 = sadd.s32 %s134, 1
      %s136 = scalar_select %p133, %s134, %s135
      %p139 = pneg %p133
      %p140 = scmp.eq.s32.totalorder %s14, 1
      %p141 = por %p139, %p140
      %p142 = scmp.ne.s32.totalorder %s134, %s137
      %p143 = scmp.eq.s32.totalorder %s14, 0
      %p144 = por %p142, %p143
      %p145 = scmp.ne.s32.totalorder %s134, %s137
      %p146 = scmp.eq.s32.totalorder %s19, 1
      %p147 = por %p145, %p146
      %p148 = scmp.ne.s32.totalorder %s137, %s138
      %p149 = scmp.eq.s32.totalorder %s19, 0
      %p150 = por %p148, %p149
      %p151 = scmp.ne.s32.totalorder %s137, %s138
      %p152 = scmp.eq.s32.totalorder %s20, 1
      %p153 = por %p151, %p152
      %p155 = scmp.ne.s32.totalorder %s138, %s154
      %p156 = scmp.eq.s32.totalorder %s20, 0
      %p157 = por %p155, %p156
      %p158 = scmp.le.s32.totalorder 1, %s14
      %p159 = scmp.lt.s32.totalorder %s14, 3
      %p160 = pnand %p158, %p159
      %p161 = pneg %p160
      // Predicated region
      $region9: #{tpu_custom_call.1} parent=5 // pred_check
        _
      $region10: #{tpu_custom_call.1} parent=5 // pred_check_branch
        %163 = sbr.rel (%p160) target = $region12
      $region11: #{tpu_custom_call.1} parent=5 // pred_region
        %s164 = ssub.s32 %s14, 1
        // Predicated region
        $region13: #{tpu_custom_call.1} parent=11 // pred_check
          %p165 = pneg %p61
        $region14: #{tpu_custom_call.1} parent=11 // pred_check_branch
          %167 = sbr.rel (%p165) target = $region16
        $region15: #{tpu_custom_call.1} parent=11 // pred_region
          _
        $region16: #{tpu_custom_call.1} parent=11 // pred_fallthru
          _
        // Predicated region
        $region17: #{tpu_custom_call.1} parent=11 // pred_check
          %p168 = pneg %p82
        $region18: #{tpu_custom_call.1} parent=11 // pred_check_branch
          %170 = sbr.rel (%p168) target = $region20
        $region19: #{tpu_custom_call.1} parent=11 // pred_region
          _
        $region20: #{tpu_custom_call.1} parent=11 // pred_fallthru
          _
        // Predicated region
        $region21: #{tpu_custom_call.1} parent=11 // pred_check
          %p171 = pneg %p103
        $region22: #{tpu_custom_call.1} parent=11 // pred_check_branch
          %173 = sbr.rel (%p171) target = $region24
        $region23: #{tpu_custom_call.1} parent=11 // pred_region
          _
        $region24: #{tpu_custom_call.1} parent=11 // pred_fallthru
          _
        // Predicated region
        $region25: #{tpu_custom_call.1} parent=11 // pred_check
          %p174 = pneg %p124
        $region26: #{tpu_custom_call.1} parent=11 // pred_check_branch
          %176 = sbr.rel (%p174) target = $region28
        $region27: #{tpu_custom_call.1} parent=11 // pred_region
          _
        $region28: #{tpu_custom_call.1} parent=11 // pred_fallthru
          _
      $region12: #{tpu_custom_call.1} parent=5 // pred_fallthru
        _
      %p177 = scmp.lt.s32.totalorder %s14, 2
      // Predicated region
      $region29: #{tpu_custom_call.1} parent=5 // pred_check
        %p178 = pneg %p177
      $region30: #{tpu_custom_call.1} parent=5 // pred_check_branch
        %180 = sbr.rel (%p178) target = $region32
      $region31: #{tpu_custom_call.1} parent=5 // pred_region
        // Predicated region
        $region33: #{tpu_custom_call.1} parent=31 // pred_check
          %p181 = pneg %p34
        $region34: #{tpu_custom_call.1} parent=31 // pred_check_branch
          %183 = sbr.rel (%p181) target = $region36
        $region35: #{tpu_custom_call.1} parent=31 // pred_region
          %s184 = smul.u32 32, %s14
          %p185 = scmp.lt.s32.totalorder %s184, 63
          %s186 = scalar_select %p185, %s184, 63
          %s187 = smul.addr %s186, 8
          %s188 = scalar_lea.vmem %s0, %s187
          %s189 = smul.u32 32, %s14
        $region36: #{tpu_custom_call.1} parent=31 // pred_fallthru
          _
      $region32: #{tpu_custom_call.1} parent=5 // pred_fallthru
        _
      %p190 = scmp.le.s32.totalorder 1, %s14
      %p191 = scmp.lt.s32.totalorder %s14, 3
      %p192 = pnand %p190, %p191
      %p193 = pneg %p192
      // Predicated region
      $region37: #{tpu_custom_call.1} parent=5 // pred_check
        _
      $region38: #{tpu_custom_call.1} parent=5 // pred_check_branch
        %195 = sbr.rel (%p192) target = $region40
      $region39: #{tpu_custom_call.1} parent=5 // pred_region
        %s196 = ssub.s32 %s14, 1
        %s197 = smul.u32 32, %s19
        %p198 = scmp.lt.s32.totalorder %s197, 63
        %s199 = scalar_select %p198, %s197, 63
        %s200 = smul.addr %s199, 8
        %s201 = scalar_lea.vmem %s0, %s200
        %p202 = pneg %p40
        %p203 = pneg %p37
        %p204 = pneg %p61
        %p205 = pneg %p58
        %p206 = pneg %p82
        %p207 = pneg %p79
        %p208 = pneg %p103
        %p209 = pneg %p100
        %p210 = pneg %p124
        %p211 = pneg %p121
        %p212 = pneg %p150
        %p213 = pneg %p147
        %s214 = sand.u32 %s137, 1
        %s215 = scalar_lea.sflag [#allocation3], %s214
        %s216 = sand.u32 %s137, 1
        %s217 = smul.addr %s216, 512
        %s218 = scalar_lea.vmem [#allocation2], %s217
        %s219 = smul.u32 32, %s19
        %p220 = scmp.lt.s32.totalorder %s219, 63
        %s221 = scalar_select %p220, %s219, 63
        %s222 = smul.addr %s221, 8
        %s223 = scalar_lea.vmem %s0, %s222
        %s224 = smul.u32 32, %s19
        %s225 = smul.u32 32, %s19
        %v226 = vld [vmem:[%s223] sm:$0xff]
        %v227 = vld [vmem:[%s223 + $0x8] sm:$0xff]
        %v228 = vld [vmem:[%s223 + $0x10] sm:$0xff]
        %v229 = vld [vmem:[%s223 + $0x18] sm:$0xff]
        %v230 = vld [vmem:[%s223 + $0x20] sm:$0xff]
        %v231 = vld [vmem:[%s223 + $0x28] sm:$0xff]
        %v232 = vld [vmem:[%s223 + $0x30] sm:$0xff]
        %v233 = vld [vmem:[%s223 + $0x38] sm:$0xff]
        %v234 = vld [vmem:[%s223 + $0x40] sm:$0xff]
        %v235 = vld [vmem:[%s223 + $0x48] sm:$0xff]
        %v236 = vld [vmem:[%s223 + $0x50] sm:$0xff]
        %v237 = vld [vmem:[%s223 + $0x58] sm:$0xff]
        %v238 = vld [vmem:[%s223 + $0x60] sm:$0xff]
        %v239 = vld [vmem:[%s223 + $0x68] sm:$0xff]
        %v240 = vld [vmem:[%s223 + $0x70] sm:$0xff]
        %v241 = vld [vmem:[%s223 + $0x78] sm:$0xff]
        %v242 = vld [vmem:[%s223 + $0x80] sm:$0xff]
        %v243 = vld [vmem:[%s223 + $0x88] sm:$0xff]
        %v244 = vld [vmem:[%s223 + $0x90] sm:$0xff]
        %v245 = vld [vmem:[%s223 + $0x98] sm:$0xff]
        %v246 = vld [vmem:[%s223 + $0xa0] sm:$0xff]
        %v247 = vld [vmem:[%s223 + $0xa8] sm:$0xff]
        %v248 = vld [vmem:[%s223 + $0xb0] sm:$0xff]
        %v249 = vld [vmem:[%s223 + $0xb8] sm:$0xff]
        %v250 = vld [vmem:[%s223 + $0xc0] sm:$0xff]
        %v251 = vld [vmem:[%s223 + $0xc8] sm:$0xff]
        %v252 = vld [vmem:[%s223 + $0xd0] sm:$0xff]
        %v253 = vld [vmem:[%s223 + $0xd8] sm:$0xff]
        %v254 = vld [vmem:[%s223 + $0xe0] sm:$0xff]
        %v255 = vld [vmem:[%s223 + $0xe8] sm:$0xff]
        %v256 = vld [vmem:[%s223 + $0xf0] sm:$0xff]
        %v257 = vld [vmem:[%s223 + $0xf8] sm:$0xff]
        %v258 = vlaneseq
        %v259 = vand.u32 %v258, 127
        %v260 = vadd.s32 %v259, 128
        %261 = vset.pattern.permute.xlu0 0
        %262 = vperm.xlu0 %261, %v226
        %v263 = vpop.permute.xlu0 %262
        %264 = vset.pattern.permute.xlu0 0
        %265 = vperm.xlu0 %264, %v227
        %v266 = vpop.permute.xlu0 %265
        %267 = vset.pattern.permute.xlu0 0
        %268 = vperm.xlu0 %267, %v228
        %v269 = vpop.permute.xlu0 %268
        %270 = vset.pattern.permute.xlu0 0
        %271 = vperm.xlu0 %270, %v229
        %v272 = vpop.permute.xlu0 %271
        %273 = vset.pattern.permute.xlu0 0
        %274 = vperm.xlu0 %273, %v230
        %v275 = vpop.permute.xlu0 %274
        %276 = vset.pattern.permute.xlu0 0
        %277 = vperm.xlu0 %276, %v231
        %v278 = vpop.permute.xlu0 %277
        %279 = vset.pattern.permute.xlu0 0
        %280 = vperm.xlu0 %279, %v232
        %v281 = vpop.permute.xlu0 %280
        %282 = vset.pattern.permute.xlu0 0
        %283 = vperm.xlu0 %282, %v233
        %v284 = vpop.permute.xlu0 %283
        %285 = vset.pattern.permute.xlu0 0
        %286 = vperm.xlu0 %285, %v234
        %v287 = vpop.permute.xlu0 %286
        %288 = vset.pattern.permute.xlu0 0
        %289 = vperm.xlu0 %288, %v235
        %v290 = vpop.permute.xlu0 %289
        %291 = vset.pattern.permute.xlu0 0
        %292 = vperm.xlu0 %291, %v236
        %v293 = vpop.permute.xlu0 %292
        %294 = vset.pattern.permute.xlu0 0
        %295 = vperm.xlu0 %294, %v237
        %v296 = vpop.permute.xlu0 %295
        %297 = vset.pattern.permute.xlu0 0
        %298 = vperm.xlu0 %297, %v238
        %v299 = vpop.permute.xlu0 %298
        %300 = vset.pattern.permute.xlu0 0
        %301 = vperm.xlu0 %300, %v239
        %v302 = vpop.permute.xlu0 %301
        %303 = vset.pattern.permute.xlu0 0
        %304 = vperm.xlu0 %303, %v240
        %v305 = vpop.permute.xlu0 %304
        %306 = vset.pattern.permute.xlu0 0
        %307 = vperm.xlu0 %306, %v241
        %v308 = vpop.permute.xlu0 %307
        %309 = vset.pattern.permute.xlu0 0
        %310 = vperm.xlu0 %309, %v242
        %v311 = vpop.permute.xlu0 %310
        %312 = vset.pattern.permute.xlu0 0
        %313 = vperm.xlu0 %312, %v243
        %v314 = vpop.permute.xlu0 %313
        %315 = vset.pattern.permute.xlu0 0
        %316 = vperm.xlu0 %315, %v244
        %v317 = vpop.permute.xlu0 %316
        %318 = vset.pattern.permute.xlu0 0
        %319 = vperm.xlu0 %318, %v245
        %v320 = vpop.permute.xlu0 %319
        %321 = vset.pattern.permute.xlu0 0
        %322 = vperm.xlu0 %321, %v246
        %v323 = vpop.permute.xlu0 %322
        %324 = vset.pattern.permute.xlu0 0
        %325 = vperm.xlu0 %324, %v247
        %v326 = vpop.permute.xlu0 %325
        %327 = vset.pattern.permute.xlu0 0
        %328 = vperm.xlu0 %327, %v248
        %v329 = vpop.permute.xlu0 %328
        %330 = vset.pattern.permute.xlu0 0
        %331 = vperm.xlu0 %330, %v249
        %v332 = vpop.permute.xlu0 %331
        %333 = vset.pattern.permute.xlu0 0
        %334 = vperm.xlu0 %333, %v250
        %v335 = vpop.permute.xlu0 %334
        %336 = vset.pattern.permute.xlu0 0
        %337 = vperm.xlu0 %336, %v251
        %v338 = vpop.permute.xlu0 %337
        %339 = vset.pattern.permute.xlu0 0
        %340 = vperm.xlu0 %339, %v252
        %v341 = vpop.permute.xlu0 %340
        %342 = vset.pattern.permute.xlu0 0
        %343 = vperm.xlu0 %342, %v253
        %v344 = vpop.permute.xlu0 %343
        %345 = vset.pattern.permute.xlu0 0
        %346 = vperm.xlu0 %345, %v254
        %v347 = vpop.permute.xlu0 %346
        %348 = vset.pattern.permute.xlu0 0
        %349 = vperm.xlu0 %348, %v255
        %v350 = vpop.permute.xlu0 %349
        %351 = vset.pattern.permute.xlu0 0
        %352 = vperm.xlu0 %351, %v256
        %v353 = vpop.permute.xlu0 %352
        %354 = vset.pattern.permute.xlu0 0
        %355 = vperm.xlu0 %354, %v257
        %v356 = vpop.permute.xlu0 %355
        %vm357 = vcmp.eq.s32.totalorder %v259, %v263
        %vm358 = vcmp.eq.s32.totalorder %v260, %v263
        %vm359 = vcmp.eq.s32.totalorder %v259, %v266
        %vm360 = vcmp.eq.s32.totalorder %v260, %v266
        %vm361 = vcmp.eq.s32.totalorder %v259, %v269
        %vm362 = vcmp.eq.s32.totalorder %v260, %v269
        %vm363 = vcmp.eq.s32.totalorder %v259, %v272
        %vm364 = vcmp.eq.s32.totalorder %v260, %v272
        %vm365 = vcmp.eq.s32.totalorder %v259, %v275
        %vm366 = vcmp.eq.s32.totalorder %v260, %v275
        %vm367 = vcmp.eq.s32.totalorder %v259, %v278
        %vm368 = vcmp.eq.s32.totalorder %v260, %v278
        %vm369 = vcmp.eq.s32.totalorder %v259, %v281
        %vm370 = vcmp.eq.s32.totalorder %v260, %v281
        %vm371 = vcmp.eq.s32.totalorder %v259, %v284
        %vm372 = vcmp.eq.s32.totalorder %v260, %v284
        %vm373 = vcmp.eq.s32.totalorder %v259, %v287
        %vm374 = vcmp.eq.s32.totalorder %v260, %v287
        %vm375 = vcmp.eq.s32.totalorder %v259, %v290
        %vm376 = vcmp.eq.s32.totalorder %v260, %v290
        %vm377 = vcmp.eq.s32.totalorder %v259, %v293
        %vm378 = vcmp.eq.s32.totalorder %v260, %v293
        %vm379 = vcmp.eq.s32.totalorder %v259, %v296
        %vm380 = vcmp.eq.s32.totalorder %v260, %v296
        %vm381 = vcmp.eq.s32.totalorder %v259, %v299
        %vm382 = vcmp.eq.s32.totalorder %v260, %v299
        %vm383 = vcmp.eq.s32.totalorder %v259, %v302
        %vm384 = vcmp.eq.s32.totalorder %v260, %v302
        %vm385 = vcmp.eq.s32.totalorder %v259, %v305
        %vm386 = vcmp.eq.s32.totalorder %v260, %v305
        %vm387 = vcmp.eq.s32.totalorder %v259, %v308
        %vm388 = vcmp.eq.s32.totalorder %v260, %v308
        %vm389 = vcmp.eq.s32.totalorder %v259, %v311
        %vm390 = vcmp.eq.s32.totalorder %v260, %v311
        %vm391 = vcmp.eq.s32.totalorder %v259, %v314
        %vm392 = vcmp.eq.s32.totalorder %v260, %v314
        %vm393 = vcmp.eq.s32.totalorder %v259, %v317
        %vm394 = vcmp.eq.s32.totalorder %v260, %v317
        %vm395 = vcmp.eq.s32.totalorder %v259, %v320
        %vm396 = vcmp.eq.s32.totalorder %v260, %v320
        %vm397 = vcmp.eq.s32.totalorder %v259, %v323
        %vm398 = vcmp.eq.s32.totalorder %v260, %v323
        %vm399 = vcmp.eq.s32.totalorder %v259, %v326
        %vm400 = vcmp.eq.s32.totalorder %v260, %v326
        %vm401 = vcmp.eq.s32.totalorder %v259, %v329
        %vm402 = vcmp.eq.s32.totalorder %v260, %v329
        %vm403 = vcmp.eq.s32.totalorder %v259, %v332
        %vm404 = vcmp.eq.s32.totalorder %v260, %v332
        %vm405 = vcmp.eq.s32.totalorder %v259, %v335
        %vm406 = vcmp.eq.s32.totalorder %v260, %v335
        %vm407 = vcmp.eq.s32.totalorder %v259, %v338
        %vm408 = vcmp.eq.s32.totalorder %v260, %v338
        %vm409 = vcmp.eq.s32.totalorder %v259, %v341
        %vm410 = vcmp.eq.s32.totalorder %v260, %v341
        %vm411 = vcmp.eq.s32.totalorder %v259, %v344
        %vm412 = vcmp.eq.s32.totalorder %v260, %v344
        %vm413 = vcmp.eq.s32.totalorder %v259, %v347
        %vm414 = vcmp.eq.s32.totalorder %v260, %v347
        %vm415 = vcmp.eq.s32.totalorder %v259, %v350
        %vm416 = vcmp.eq.s32.totalorder %v260, %v350
        %vm417 = vcmp.eq.s32.totalorder %v259, %v353
        %vm418 = vcmp.eq.s32.totalorder %v260, %v353
        %vm419 = vcmp.eq.s32.totalorder %v259, %v356
        %vm420 = vcmp.eq.s32.totalorder %v260, %v356
        %v421 = vsel %vm357, 1, 0
        %v422 = vsel %vm358, 1, 0
        %v423 = vsel %vm359, 1, 0
        %v424 = vsel %vm360, 1, 0
        %v425 = vsel %vm361, 1, 0
        %v426 = vsel %vm362, 1, 0
        %v427 = vsel %vm363, 1, 0
        %v428 = vsel %vm364, 1, 0
        %v429 = vsel %vm365, 1, 0
        %v430 = vsel %vm366, 1, 0
        %v431 = vsel %vm367, 1, 0
        %v432 = vsel %vm368, 1, 0
        %v433 = vsel %vm369, 1, 0
        %v434 = vsel %vm370, 1, 0
        %v435 = vsel %vm371, 1, 0
        %v436 = vsel %vm372, 1, 0
        %v437 = vsel %vm373, 1, 0
        %v438 = vsel %vm374, 1, 0
        %v439 = vsel %vm375, 1, 0
        %v440 = vsel %vm376, 1, 0
        %v441 = vsel %vm377, 1, 0
        %v442 = vsel %vm378, 1, 0
        %v443 = vsel %vm379, 1, 0
        %v444 = vsel %vm380, 1, 0
        %v445 = vsel %vm381, 1, 0
        %v446 = vsel %vm382, 1, 0
        %v447 = vsel %vm383, 1, 0
        %v448 = vsel %vm384, 1, 0
        %v449 = vsel %vm385, 1, 0
        %v450 = vsel %vm386, 1, 0
        %v451 = vsel %vm387, 1, 0
        %v452 = vsel %vm388, 1, 0
        %v453 = vsel %vm389, 1, 0
        %v454 = vsel %vm390, 1, 0
        %v455 = vsel %vm391, 1, 0
        %v456 = vsel %vm392, 1, 0
        %v457 = vsel %vm393, 1, 0
        %v458 = vsel %vm394, 1, 0
        %v459 = vsel %vm395, 1, 0
        %v460 = vsel %vm396, 1, 0
        %v461 = vsel %vm397, 1, 0
        %v462 = vsel %vm398, 1, 0
        %v463 = vsel %vm399, 1, 0
        %v464 = vsel %vm400, 1, 0
        %v465 = vsel %vm401, 1, 0
        %v466 = vsel %vm402, 1, 0
        %v467 = vsel %vm403, 1, 0
        %v468 = vsel %vm404, 1, 0
        %v469 = vsel %vm405, 1, 0
        %v470 = vsel %vm406, 1, 0
        %v471 = vsel %vm407, 1, 0
        %v472 = vsel %vm408, 1, 0
        %v473 = vsel %vm409, 1, 0
        %v474 = vsel %vm410, 1, 0
        %v475 = vsel %vm411, 1, 0
        %v476 = vsel %vm412, 1, 0
        %v477 = vsel %vm413, 1, 0
        %v478 = vsel %vm414, 1, 0
        %v479 = vsel %vm415, 1, 0
        %v480 = vsel %vm416, 1, 0
        %v481 = vsel %vm417, 1, 0
        %v482 = vsel %vm418, 1, 0
        %v483 = vsel %vm419, 1, 0
        %v484 = vsel %vm420, 1, 0
        %v485 = vcvt.s32.f32 %v421
        %v486 = vcvt.s32.f32 %v422
        %v487 = vcvt.s32.f32 %v423
        %v488 = vcvt.s32.f32 %v424
        %v489 = vcvt.s32.f32 %v425
        %v490 = vcvt.s32.f32 %v426
        %v491 = vcvt.s32.f32 %v427
        %v492 = vcvt.s32.f32 %v428
        %v493 = vcvt.s32.f32 %v429
        %v494 = vcvt.s32.f32 %v430
        %v495 = vcvt.s32.f32 %v431
        %v496 = vcvt.s32.f32 %v432
        %v497 = vcvt.s32.f32 %v433
        %v498 = vcvt.s32.f32 %v434
        %v499 = vcvt.s32.f32 %v435
        %v500 = vcvt.s32.f32 %v436
        %v501 = vcvt.s32.f32 %v437
        %v502 = vcvt.s32.f32 %v438
        %v503 = vcvt.s32.f32 %v439
        %v504 = vcvt.s32.f32 %v440
        %v505 = vcvt.s32.f32 %v441
        %v506 = vcvt.s32.f32 %v442
        %v507 = vcvt.s32.f32 %v443
        %v508 = vcvt.s32.f32 %v444
        %v509 = vcvt.s32.f32 %v445
        %v510 = vcvt.s32.f32 %v446
        %v511 = vcvt.s32.f32 %v447
        %v512 = vcvt.s32.f32 %v448
        %v513 = vcvt.s32.f32 %v449
        %v514 = vcvt.s32.f32 %v450
        %v515 = vcvt.s32.f32 %v451
        %v516 = vcvt.s32.f32 %v452
        %v517 = vcvt.s32.f32 %v453
        %v518 = vcvt.s32.f32 %v454
        %v519 = vcvt.s32.f32 %v455
        %v520 = vcvt.s32.f32 %v456
        %v521 = vcvt.s32.f32 %v457
        %v522 = vcvt.s32.f32 %v458
        %v523 = vcvt.s32.f32 %v459
        %v524 = vcvt.s32.f32 %v460
        %v525 = vcvt.s32.f32 %v461
        %v526 = vcvt.s32.f32 %v462
        %v527 = vcvt.s32.f32 %v463
        %v528 = vcvt.s32.f32 %v464
        %v529 = vcvt.s32.f32 %v465
        %v530 = vcvt.s32.f32 %v466
        %v531 = vcvt.s32.f32 %v467
        %v532 = vcvt.s32.f32 %v468
        %v533 = vcvt.s32.f32 %v469
        %v534 = vcvt.s32.f32 %v470
        %v535 = vcvt.s32.f32 %v471
        %v536 = vcvt.s32.f32 %v472
        %v537 = vcvt.s32.f32 %v473
        %v538 = vcvt.s32.f32 %v474
        %v539 = vcvt.s32.f32 %v475
        %v540 = vcvt.s32.f32 %v476
        %v541 = vcvt.s32.f32 %v477
        %v542 = vcvt.s32.f32 %v478
        %v543 = vcvt.s32.f32 %v479
        %v544 = vcvt.s32.f32 %v480
        %v545 = vcvt.s32.f32 %v481
        %v546 = vcvt.s32.f32 %v482
        %v547 = vcvt.s32.f32 %v483
        %v548 = vcvt.s32.f32 %v484
        %v549 = vpack.c.bf16 %v486, %v485
        %v550 = vpack.c.bf16 %v488, %v487
        %v551 = vpack.c.bf16 %v490, %v489
        %v552 = vpack.c.bf16 %v492, %v491
        %v553 = vpack.c.bf16 %v494, %v493
        %v554 = vpack.c.bf16 %v496, %v495
        %v555 = vpack.c.bf16 %v498, %v497
        %v556 = vpack.c.bf16 %v500, %v499
        %v557 = vpack.c.bf16 %v502, %v501
        %v558 = vpack.c.bf16 %v504, %v503
        %v559 = vpack.c.bf16 %v506, %v505
        %v560 = vpack.c.bf16 %v508, %v507
        %v561 = vpack.c.bf16 %v510, %v509
        %v562 = vpack.c.bf16 %v512, %v511
        %v563 = vpack.c.bf16 %v514, %v513
        %v564 = vpack.c.bf16 %v516, %v515
        %v565 = vpack.c.bf16 %v518, %v517
        %v566 = vpack.c.bf16 %v520, %v519
        %v567 = vpack.c.bf16 %v522, %v521
        %v568 = vpack.c.bf16 %v524, %v523
        %v569 = vpack.c.bf16 %v526, %v525
        %v570 = vpack.c.bf16 %v528, %v527
        %v571 = vpack.c.bf16 %v530, %v529
        %v572 = vpack.c.bf16 %v532, %v531
        %v573 = vpack.c.bf16 %v534, %v533
        %v574 = vpack.c.bf16 %v536, %v535
        %v575 = vpack.c.bf16 %v538, %v537
        %v576 = vpack.c.bf16 %v540, %v539
        %v577 = vpack.c.bf16 %v542, %v541
        %v578 = vpack.c.bf16 %v544, %v543
        %v579 = vpack.c.bf16 %v546, %v545
        %v580 = vpack.c.bf16 %v548, %v547
        %581 = vset.pattern.permute.xlu0 1
        %582 = vperm.xlu0 %581, %v226
        %v583 = vpop.permute.xlu0 %582
        %584 = vset.pattern.permute.xlu0 1
        %585 = vperm.xlu0 %584, %v227
        %v586 = vpop.permute.xlu0 %585
        %587 = vset.pattern.permute.xlu0 1
        %588 = vperm.xlu0 %587, %v228
        %v589 = vpop.permute.xlu0 %588
        %590 = vset.pattern.permute.xlu0 1
        %591 = vperm.xlu0 %590, %v229
        %v592 = vpop.permute.xlu0 %591
        %593 = vset.pattern.permute.xlu0 1
        %594 = vperm.xlu0 %593, %v230
        %v595 = vpop.permute.xlu0 %594
        %596 = vset.pattern.permute.xlu0 1
        %597 = vperm.xlu0 %596, %v231
        %v598 = vpop.permute.xlu0 %597
        %599 = vset.pattern.permute.xlu0 1
        %600 = vperm.xlu0 %599, %v232
        %v601 = vpop.permute.xlu0 %600
        %602 = vset.pattern.permute.xlu0 1
        %603 = vperm.xlu0 %602, %v233
        %v604 = vpop.permute.xlu0 %603
        %605 = vset.pattern.permute.xlu0 1
        %606 = vperm.xlu0 %605, %v234
        %v607 = vpop.permute.xlu0 %606
        %608 = vset.pattern.permute.xlu0 1
        %609 = vperm.xlu0 %608, %v235
        %v610 = vpop.permute.xlu0 %609
        %611 = vset.pattern.permute.xlu0 1
        %612 = vperm.xlu0 %611, %v236
        %v613 = vpop.permute.xlu0 %612
        %614 = vset.pattern.permute.xlu0 1
        %615 = vperm.xlu0 %614, %v237
        %v616 = vpop.permute.xlu0 %615
        %617 = vset.pattern.permute.xlu0 1
        %618 = vperm.xlu0 %617, %v238
        %v619 = vpop.permute.xlu0 %618
        %620 = vset.pattern.permute.xlu0 1
        %621 = vperm.xlu0 %620, %v239
        %v622 = vpop.permute.xlu0 %621
        %623 = vset.pattern.permute.xlu0 1
        %624 = vperm.xlu0 %623, %v240
        %v625 = vpop.permute.xlu0 %624
        %626 = vset.pattern.permute.xlu0 1
        %627 = vperm.xlu0 %626, %v241
        %v628 = vpop.permute.xlu0 %627
        %629 = vset.pattern.permute.xlu0 1
        %630 = vperm.xlu0 %629, %v242
        %v631 = vpop.permute.xlu0 %630
        %632 = vset.pattern.permute.xlu0 1
        %633 = vperm.xlu0 %632, %v243
        %v634 = vpop.permute.xlu0 %633
        %635 = vset.pattern.permute.xlu0 1
        %636 = vperm.xlu0 %635, %v244
        %v637 = vpop.permute.xlu0 %636
        %638 = vset.pattern.permute.xlu0 1
        %639 = vperm.xlu0 %638, %v245
        %v640 = vpop.permute.xlu0 %639
        %641 = vset.pattern.permute.xlu0 1
        %642 = vperm.xlu0 %641, %v246
        %v643 = vpop.permute.xlu0 %642
        %644 = vset.pattern.permute.xlu0 1
        %645 = vperm.xlu0 %644, %v247
        %v646 = vpop.permute.xlu0 %645
        %647 = vset.pattern.permute.xlu0 1
        %648 = vperm.xlu0 %647, %v248
        %v649 = vpop.permute.xlu0 %648
        %650 = vset.pattern.permute.xlu0 1
        %651 = vperm.xlu0 %650, %v249
        %v652 = vpop.permute.xlu0 %651
        %653 = vset.pattern.permute.xlu0 1
        %654 = vperm.xlu0 %653, %v250
        %v655 = vpop.permute.xlu0 %654
        %656 = vset.pattern.permute.xlu0 1
        %657 = vperm.xlu0 %656, %v251
        %v658 = vpop.permute.xlu0 %657
        %659 = vset.pattern.permute.xlu0 1
        %660 = vperm.xlu0 %659, %v252
        %v661 = vpop.permute.xlu0 %660
        %662 = vset.pattern.permute.xlu0 1
        %663 = vperm.xlu0 %662, %v253
        %v664 = vpop.permute.xlu0 %663
        %665 = vset.pattern.permute.xlu0 1
        %666 = vperm.xlu0 %665, %v254
        %v667 = vpop.permute.xlu0 %666
        %668 = vset.pattern.permute.xlu0 1
        %669 = vperm.xlu0 %668, %v255
        %v670 = vpop.permute.xlu0 %669
        %671 = vset.pattern.permute.xlu0 1
        %672 = vperm.xlu0 %671, %v256
        %v673 = vpop.permute.xlu0 %672
        %674 = vset.pattern.permute.xlu0 1
        %675 = vperm.xlu0 %674, %v257
        %v676 = vpop.permute.xlu0 %675
        %vm677 = vcmp.eq.s32.totalorder %v259, %v583
        %vm678 = vcmp.eq.s32.totalorder %v260, %v583
        %vm679 = vcmp.eq.s32.totalorder %v259, %v586
        %vm680 = vcmp.eq.s32.totalorder %v260, %v586
        %vm681 = vcmp.eq.s32.totalorder %v259, %v589
        %vm682 = vcmp.eq.s32.totalorder %v260, %v589
        %vm683 = vcmp.eq.s32.totalorder %v259, %v592
        %vm684 = vcmp.eq.s32.totalorder %v260, %v592
        %vm685 = vcmp.eq.s32.totalorder %v259, %v595
        %vm686 = vcmp.eq.s32.totalorder %v260, %v595
        %vm687 = vcmp.eq.s32.totalorder %v259, %v598
        %vm688 = vcmp.eq.s32.totalorder %v260, %v598
        %vm689 = vcmp.eq.s32.totalorder %v259, %v601
        %vm690 = vcmp.eq.s32.totalorder %v260, %v601
        %vm691 = vcmp.eq.s32.totalorder %v259, %v604
        %vm692 = vcmp.eq.s32.totalorder %v260, %v604
        %vm693 = vcmp.eq.s32.totalorder %v259, %v607
        %vm694 = vcmp.eq.s32.totalorder %v260, %v607
        %vm695 = vcmp.eq.s32.totalorder %v259, %v610
        %vm696 = vcmp.eq.s32.totalorder %v260, %v610
        %vm697 = vcmp.eq.s32.totalorder %v259, %v613
        %vm698 = vcmp.eq.s32.totalorder %v260, %v613
        %vm699 = vcmp.eq.s32.totalorder %v259, %v616
        %vm700 = vcmp.eq.s32.totalorder %v260, %v616
        %vm701 = vcmp.eq.s32.totalorder %v259, %v619
        %vm702 = vcmp.eq.s32.totalorder %v260, %v619
        %vm703 = vcmp.eq.s32.totalorder %v259, %v622
        %vm704 = vcmp.eq.s32.totalorder %v260, %v622
        %vm705 = vcmp.eq.s32.totalorder %v259, %v625
        %vm706 = vcmp.eq.s32.totalorder %v260, %v625
        %vm707 = vcmp.eq.s32.totalorder %v259, %v628
        %vm708 = vcmp.eq.s32.totalorder %v260, %v628
        %vm709 = vcmp.eq.s32.totalorder %v259, %v631
        %vm710 = vcmp.eq.s32.totalorder %v260, %v631
        %vm711 = vcmp.eq.s32.totalorder %v259, %v634
        %vm712 = vcmp.eq.s32.totalorder %v260, %v634
        %vm713 = vcmp.eq.s32.totalorder %v259, %v637
        %vm714 = vcmp.eq.s32.totalorder %v260, %v637
        %vm715 = vcmp.eq.s32.totalorder %v259, %v640
        %vm716 = vcmp.eq.s32.totalorder %v260, %v640
        %vm717 = vcmp.eq.s32.totalorder %v259, %v643
        %vm718 = vcmp.eq.s32.totalorder %v260, %v643
        %vm719 = vcmp.eq.s32.totalorder %v259, %v646
        %vm720 = vcmp.eq.s32.totalorder %v260, %v646
        %vm721 = vcmp.eq.s32.totalorder %v259, %v649
        %vm722 = vcmp.eq.s32.totalorder %v260, %v649
        %vm723 = vcmp.eq.s32.totalorder %v259, %v652
        %vm724 = vcmp.eq.s32.totalorder %v260, %v652
        %vm725 = vcmp.eq.s32.totalorder %v259, %v655
        %vm726 = vcmp.eq.s32.totalorder %v260, %v655
        %vm727 = vcmp.eq.s32.totalorder %v259, %v658
        %vm728 = vcmp.eq.s32.totalorder %v260, %v658
        %vm729 = vcmp.eq.s32.totalorder %v259, %v661
        %vm730 = vcmp.eq.s32.totalorder %v260, %v661
        %vm731 = vcmp.eq.s32.totalorder %v259, %v664
        %vm732 = vcmp.eq.s32.totalorder %v260, %v664
        %vm733 = vcmp.eq.s32.totalorder %v259, %v667
        %vm734 = vcmp.eq.s32.totalorder %v260, %v667
        %vm735 = vcmp.eq.s32.totalorder %v259, %v670
        %vm736 = vcmp.eq.s32.totalorder %v260, %v670
        %vm737 = vcmp.eq.s32.totalorder %v259, %v673
        %vm738 = vcmp.eq.s32.totalorder %v260, %v673
        %vm739 = vcmp.eq.s32.totalorder %v259, %v676
        %vm740 = vcmp.eq.s32.totalorder %v260, %v676
        %v741 = vsel %vm677, 1, 0
        %v742 = vsel %vm678, 1, 0
        %v743 = vsel %vm679, 1, 0
        %v744 = vsel %vm680, 1, 0
        %v745 = vsel %vm681, 1, 0
        %v746 = vsel %vm682, 1, 0
        %v747 = vsel %vm683, 1, 0
        %v748 = vsel %vm684, 1, 0
        %v749 = vsel %vm685, 1, 0
        %v750 = vsel %vm686, 1, 0
        %v751 = vsel %vm687, 1, 0
        %v752 = vsel %vm688, 1, 0
        %v753 = vsel %vm689, 1, 0
        %v754 = vsel %vm690, 1, 0
        %v755 = vsel %vm691, 1, 0
        %v756 = vsel %vm692, 1, 0
        %v757 = vsel %vm693, 1, 0
        %v758 = vsel %vm694, 1, 0
        %v759 = vsel %vm695, 1, 0
        %v760 = vsel %vm696, 1, 0
        %v761 = vsel %vm697, 1, 0
        %v762 = vsel %vm698, 1, 0
        %v763 = vsel %vm699, 1, 0
        %v764 = vsel %vm700, 1, 0
        %v765 = vsel %vm701, 1, 0
        %v766 = vsel %vm702, 1, 0
        %v767 = vsel %vm703, 1, 0
        %v768 = vsel %vm704, 1, 0
        %v769 = vsel %vm705, 1, 0
        %v770 = vsel %vm706, 1, 0
        %v771 = vsel %vm707, 1, 0
        %v772 = vsel %vm708, 1, 0
        %v773 = vsel %vm709, 1, 0
        %v774 = vsel %vm710, 1, 0
        %v775 = vsel %vm711, 1, 0
        %v776 = vsel %vm712, 1, 0
        %v777 = vsel %vm713, 1, 0
        %v778 = vsel %vm714, 1, 0
        %v779 = vsel %vm715, 1, 0
        %v780 = vsel %vm716, 1, 0
        %v781 = vsel %vm717, 1, 0
        %v782 = vsel %vm718, 1, 0
        %v783 = vsel %vm719, 1, 0
        %v784 = vsel %vm720, 1, 0
        %v785 = vsel %vm721, 1, 0
        %v786 = vsel %vm722, 1, 0
        %v787 = vsel %vm723, 1, 0
        %v788 = vsel %vm724, 1, 0
        %v789 = vsel %vm725, 1, 0
        %v790 = vsel %vm726, 1, 0
        %v791 = vsel %vm727, 1, 0
        %v792 = vsel %vm728, 1, 0
        %v793 = vsel %vm729, 1, 0
        %v794 = vsel %vm730, 1, 0
        %v795 = vsel %vm731, 1, 0
        %v796 = vsel %vm732, 1, 0
        %v797 = vsel %vm733, 1, 0
        %v798 = vsel %vm734, 1, 0
        %v799 = vsel %vm735, 1, 0
        %v800 = vsel %vm736, 1, 0
        %v801 = vsel %vm737, 1, 0
        %v802 = vsel %vm738, 1, 0
        %v803 = vsel %vm739, 1, 0
        %v804 = vsel %vm740, 1, 0
        %v805 = vcvt.s32.f32 %v741
        %v806 = vcvt.s32.f32 %v742
        %v807 = vcvt.s32.f32 %v743
        %v808 = vcvt.s32.f32 %v744
        %v809 = vcvt.s32.f32 %v745
        %v810 = vcvt.s32.f32 %v746
        %v811 = vcvt.s32.f32 %v747
        %v812 = vcvt.s32.f32 %v748
        %v813 = vcvt.s32.f32 %v749
        %v814 = vcvt.s32.f32 %v750
        %v815 = vcvt.s32.f32 %v751
        %v816 = vcvt.s32.f32 %v752
        %v817 = vcvt.s32.f32 %v753
        %v818 = vcvt.s32.f32 %v754
        %v819 = vcvt.s32.f32 %v755
        %v820 = vcvt.s32.f32 %v756
        %v821 = vcvt.s32.f32 %v757
        %v822 = vcvt.s32.f32 %v758
        %v823 = vcvt.s32.f32 %v759
        %v824 = vcvt.s32.f32 %v760
        %v825 = vcvt.s32.f32 %v761
        %v826 = vcvt.s32.f32 %v762
        %v827 = vcvt.s32.f32 %v763
        %v828 = vcvt.s32.f32 %v764
        %v829 = vcvt.s32.f32 %v765
        %v830 = vcvt.s32.f32 %v766
        %v831 = vcvt.s32.f32 %v767
        %v832 = vcvt.s32.f32 %v768
        %v833 = vcvt.s32.f32 %v769
        %v834 = vcvt.s32.f32 %v770
        %v835 = vcvt.s32.f32 %v771
        %v836 = vcvt.s32.f32 %v772
        %v837 = vcvt.s32.f32 %v773
        %v838 = vcvt.s32.f32 %v774
        %v839 = vcvt.s32.f32 %v775
        %v840 = vcvt.s32.f32 %v776
        %v841 = vcvt.s32.f32 %v777
        %v842 = vcvt.s32.f32 %v778
        %v843 = vcvt.s32.f32 %v779
        %v844 = vcvt.s32.f32 %v780
        %v845 = vcvt.s32.f32 %v781
        %v846 = vcvt.s32.f32 %v782
        %v847 = vcvt.s32.f32 %v783
        %v848 = vcvt.s32.f32 %v784
        %v849 = vcvt.s32.f32 %v785
        %v850 = vcvt.s32.f32 %v786
        %v851 = vcvt.s32.f32 %v787
        %v852 = vcvt.s32.f32 %v788
        %v853 = vcvt.s32.f32 %v789
        %v854 = vcvt.s32.f32 %v790
        %v855 = vcvt.s32.f32 %v791
        %v856 = vcvt.s32.f32 %v792
        %v857 = vcvt.s32.f32 %v793
        %v858 = vcvt.s32.f32 %v794
        %v859 = vcvt.s32.f32 %v795
        %v860 = vcvt.s32.f32 %v796
        %v861 = vcvt.s32.f32 %v797
        %v862 = vcvt.s32.f32 %v798
        %v863 = vcvt.s32.f32 %v799
        %v864 = vcvt.s32.f32 %v800
        %v865 = vcvt.s32.f32 %v801
        %v866 = vcvt.s32.f32 %v802
        %v867 = vcvt.s32.f32 %v803
        %v868 = vcvt.s32.f32 %v804
        %v869 = vpack.c.bf16 %v806, %v805
        %v870 = vpack.c.bf16 %v808, %v807
        %v871 = vpack.c.bf16 %v810, %v809
        %v872 = vpack.c.bf16 %v812, %v811
        %v873 = vpack.c.bf16 %v814, %v813
        %v874 = vpack.c.bf16 %v816, %v815
        %v875 = vpack.c.bf16 %v818, %v817
        %v876 = vpack.c.bf16 %v820, %v819
        %v877 = vpack.c.bf16 %v822, %v821
        %v878 = vpack.c.bf16 %v824, %v823
        %v879 = vpack.c.bf16 %v826, %v825
        %v880 = vpack.c.bf16 %v828, %v827
        %v881 = vpack.c.bf16 %v830, %v829
        %v882 = vpack.c.bf16 %v832, %v831
        %v883 = vpack.c.bf16 %v834, %v833
        %v884 = vpack.c.bf16 %v836, %v835
        %v885 = vpack.c.bf16 %v838, %v837
        %v886 = vpack.c.bf16 %v840, %v839
        %v887 = vpack.c.bf16 %v842, %v841
        %v888 = vpack.c.bf16 %v844, %v843
        %v889 = vpack.c.bf16 %v846, %v845
        %v890 = vpack.c.bf16 %v848, %v847
        %v891 = vpack.c.bf16 %v850, %v849
        %v892 = vpack.c.bf16 %v852, %v851
        %v893 = vpack.c.bf16 %v854, %v853
        %v894 = vpack.c.bf16 %v856, %v855
        %v895 = vpack.c.bf16 %v858, %v857
        %v896 = vpack.c.bf16 %v860, %v859
        %v897 = vpack.c.bf16 %v862, %v861
        %v898 = vpack.c.bf16 %v864, %v863
        %v899 = vpack.c.bf16 %v866, %v865
        %v900 = vpack.c.bf16 %v868, %v867
        %v933 = vunpack.c.l.b16 %v549
        %v934 = vunpack.c.h.b16 %v549
        %v935 = vunpack.c.l.b16 %v550
        %v936 = vunpack.c.h.b16 %v550
        %v937 = vunpack.c.l.b16 %v551
        %v938 = vunpack.c.h.b16 %v551
        %v939 = vunpack.c.l.b16 %v552
        %v940 = vunpack.c.h.b16 %v552
        %v941 = vunpack.c.l.b16 %v553
        %v942 = vunpack.c.h.b16 %v553
        %v943 = vunpack.c.l.b16 %v554
        %v944 = vunpack.c.h.b16 %v554
        %v945 = vunpack.c.l.b16 %v555
        %v946 = vunpack.c.h.b16 %v555
        %v947 = vunpack.c.l.b16 %v556
        %v948 = vunpack.c.h.b16 %v556
        %v949 = vunpack.c.l.b16 %v557
        %v950 = vunpack.c.h.b16 %v557
        %v951 = vunpack.c.l.b16 %v558
        %v952 = vunpack.c.h.b16 %v558
        %v953 = vunpack.c.l.b16 %v559
        %v954 = vunpack.c.h.b16 %v559
        %v955 = vunpack.c.l.b16 %v560
        %v956 = vunpack.c.h.b16 %v560
        %v957 = vunpack.c.l.b16 %v561
        %v958 = vunpack.c.h.b16 %v561
        %v959 = vunpack.c.l.b16 %v562
        %v960 = vunpack.c.h.b16 %v562
        %v961 = vunpack.c.l.b16 %v563
        %v962 = vunpack.c.h.b16 %v563
        %v963 = vunpack.c.l.b16 %v564
        %v964 = vunpack.c.h.b16 %v564
        %v965 = vunpack.c.l.b16 %v565
        %v966 = vunpack.c.h.b16 %v565
        %v967 = vunpack.c.l.b16 %v566
        %v968 = vunpack.c.h.b16 %v566
        %v969 = vunpack.c.l.b16 %v567
        %v970 = vunpack.c.h.b16 %v567
        %v971 = vunpack.c.l.b16 %v568
        %v972 = vunpack.c.h.b16 %v568
        %v973 = vunpack.c.l.b16 %v569
        %v974 = vunpack.c.h.b16 %v569
        %v975 = vunpack.c.l.b16 %v570
        %v976 = vunpack.c.h.b16 %v570
        %v977 = vunpack.c.l.b16 %v571
        %v978 = vunpack.c.h.b16 %v571
        %v979 = vunpack.c.l.b16 %v572
        %v980 = vunpack.c.h.b16 %v572
        %v981 = vunpack.c.l.b16 %v573
        %v982 = vunpack.c.h.b16 %v573
        %v983 = vunpack.c.l.b16 %v574
        %v984 = vunpack.c.h.b16 %v574
        %v985 = vunpack.c.l.b16 %v575
        %v986 = vunpack.c.h.b16 %v575
        %v987 = vunpack.c.l.b16 %v576
        %v988 = vunpack.c.h.b16 %v576
        %v989 = vunpack.c.l.b16 %v577
        %v990 = vunpack.c.h.b16 %v577
        %v991 = vunpack.c.l.b16 %v578
        %v992 = vunpack.c.h.b16 %v578
        %v993 = vunpack.c.l.b16 %v579
        %v994 = vunpack.c.h.b16 %v579
        %v995 = vunpack.c.l.b16 %v580
        %v996 = vunpack.c.h.b16 %v580
        %v997 = vpack.c.b16 %v935, %v933
        %v998 = vpack.c.b16 %v936, %v934
        %v999 = vpack.c.b16 %v939, %v937
        %v1000 = vpack.c.b16 %v940, %v938
        %v1001 = vpack.c.b16 %v943, %v941
        %v1002 = vpack.c.b16 %v944, %v942
        %v1003 = vpack.c.b16 %v947, %v945
        %v1004 = vpack.c.b16 %v948, %v946
        %v1005 = vpack.c.b16 %v951, %v949
        %v1006 = vpack.c.b16 %v952, %v950
        %v1007 = vpack.c.b16 %v955, %v953
        %v1008 = vpack.c.b16 %v956, %v954
        %v1009 = vpack.c.b16 %v959, %v957
        %v1010 = vpack.c.b16 %v960, %v958
        %v1011 = vpack.c.b16 %v963, %v961
        %v1012 = vpack.c.b16 %v964, %v962
        %v1013 = vpack.c.b16 %v967, %v965
        %v1014 = vpack.c.b16 %v968, %v966
        %v1015 = vpack.c.b16 %v971, %v969
        %v1016 = vpack.c.b16 %v972, %v970
        %v1017 = vpack.c.b16 %v975, %v973
        %v1018 = vpack.c.b16 %v976, %v974
        %v1019 = vpack.c.b16 %v979, %v977
        %v1020 = vpack.c.b16 %v980, %v978
        %v1021 = vpack.c.b16 %v983, %v981
        %v1022 = vpack.c.b16 %v984, %v982
        %v1023 = vpack.c.b16 %v987, %v985
        %v1024 = vpack.c.b16 %v988, %v986
        %v1025 = vpack.c.b16 %v991, %v989
        %v1026 = vpack.c.b16 %v992, %v990
        %v1027 = vpack.c.b16 %v995, %v993
        %v1028 = vpack.c.b16 %v996, %v994
        %v1093 = vunpack.c.l.b16 %v869
        %v1094 = vunpack.c.h.b16 %v869
        %v1095 = vunpack.c.l.b16 %v870
        %v1096 = vunpack.c.h.b16 %v870
        %v1097 = vunpack.c.l.b16 %v871
        %v1098 = vunpack.c.h.b16 %v871
        %v1099 = vunpack.c.l.b16 %v872
        %v1100 = vunpack.c.h.b16 %v872
        %v1101 = vunpack.c.l.b16 %v873
        %v1102 = vunpack.c.h.b16 %v873
        %v1103 = vunpack.c.l.b16 %v874
        %v1104 = vunpack.c.h.b16 %v874
        %v1105 = vunpack.c.l.b16 %v875
        %v1106 = vunpack.c.h.b16 %v875
        %v1107 = vunpack.c.l.b16 %v876
        %v1108 = vunpack.c.h.b16 %v876
        %v1109 = vunpack.c.l.b16 %v877
        %v1110 = vunpack.c.h.b16 %v877
        %v1111 = vunpack.c.l.b16 %v878
        %v1112 = vunpack.c.h.b16 %v878
        %v1113 = vunpack.c.l.b16 %v879
        %v1114 = vunpack.c.h.b16 %v879
        %v1115 = vunpack.c.l.b16 %v880
        %v1116 = vunpack.c.h.b16 %v880
        %v1117 = vunpack.c.l.b16 %v881
        %v1118 = vunpack.c.h.b16 %v881
        %v1119 = vunpack.c.l.b16 %v882
        %v1120 = vunpack.c.h.b16 %v882
        %v1121 = vunpack.c.l.b16 %v883
        %v1122 = vunpack.c.h.b16 %v883
        %v1123 = vunpack.c.l.b16 %v884
        %v1124 = vunpack.c.h.b16 %v884
        %v1125 = vunpack.c.l.b16 %v885
        %v1126 = vunpack.c.h.b16 %v885
        %v1127 = vunpack.c.l.b16 %v886
        %v1128 = vunpack.c.h.b16 %v886
        %v1129 = vunpack.c.l.b16 %v887
        %v1130 = vunpack.c.h.b16 %v887
        %v1131 = vunpack.c.l.b16 %v888
        %v1132 = vunpack.c.h.b16 %v888
        %v1133 = vunpack.c.l.b16 %v889
        %v1134 = vunpack.c.h.b16 %v889
        %v1135 = vunpack.c.l.b16 %v890
        %v1136 = vunpack.c.h.b16 %v890
        %v1137 = vunpack.c.l.b16 %v891
        %v1138 = vunpack.c.h.b16 %v891
        %v1139 = vunpack.c.l.b16 %v892
        %v1140 = vunpack.c.h.b16 %v892
        %v1141 = vunpack.c.l.b16 %v893
        %v1142 = vunpack.c.h.b16 %v893
        %v1143 = vunpack.c.l.b16 %v894
        %v1144 = vunpack.c.h.b16 %v894
        %v1145 = vunpack.c.l.b16 %v895
        %v1146 = vunpack.c.h.b16 %v895
        %v1147 = vunpack.c.l.b16 %v896
        %v1148 = vunpack.c.h.b16 %v896
        %v1149 = vunpack.c.l.b16 %v897
        %v1150 = vunpack.c.h.b16 %v897
        %v1151 = vunpack.c.l.b16 %v898
        %v1152 = vunpack.c.h.b16 %v898
        %v1153 = vunpack.c.l.b16 %v899
        %v1154 = vunpack.c.h.b16 %v899
        %v1155 = vunpack.c.l.b16 %v900
        %v1156 = vunpack.c.h.b16 %v900
        %v1157 = vpack.c.b16 %v1095, %v1093
        %v1158 = vpack.c.b16 %v1096, %v1094
        %v1159 = vpack.c.b16 %v1099, %v1097
        %v1160 = vpack.c.b16 %v1100, %v1098
        %v1161 = vpack.c.b16 %v1103, %v1101
        %v1162 = vpack.c.b16 %v1104, %v1102
        %v1163 = vpack.c.b16 %v1107, %v1105
        %v1164 = vpack.c.b16 %v1108, %v1106
        %v1165 = vpack.c.b16 %v1111, %v1109
        %v1166 = vpack.c.b16 %v1112, %v1110
        %v1167 = vpack.c.b16 %v1115, %v1113
        %v1168 = vpack.c.b16 %v1116, %v1114
        %v1169 = vpack.c.b16 %v1119, %v1117
        %v1170 = vpack.c.b16 %v1120, %v1118
        %v1171 = vpack.c.b16 %v1123, %v1121
        %v1172 = vpack.c.b16 %v1124, %v1122
        %v1173 = vpack.c.b16 %v1127, %v1125
        %v1174 = vpack.c.b16 %v1128, %v1126
        %v1175 = vpack.c.b16 %v1131, %v1129
        %v1176 = vpack.c.b16 %v1132, %v1130
        %v1177 = vpack.c.b16 %v1135, %v1133
        %v1178 = vpack.c.b16 %v1136, %v1134
        %v1179 = vpack.c.b16 %v1139, %v1137
        %v1180 = vpack.c.b16 %v1140, %v1138
        %v1181 = vpack.c.b16 %v1143, %v1141
        %v1182 = vpack.c.b16 %v1144, %v1142
        %v1183 = vpack.c.b16 %v1147, %v1145
        %v1184 = vpack.c.b16 %v1148, %v1146
        %v1185 = vpack.c.b16 %v1151, %v1149
        %v1186 = vpack.c.b16 %v1152, %v1150
        %v1187 = vpack.c.b16 %v1155, %v1153
        %v1188 = vpack.c.b16 %v1156, %v1154
        %v1221 = vld [vmem:[%s1] sm:$0xf]
        %v1222 = vld [vmem:[%s1 + $0x4] sm:$0xf]
        %v1223 = vld [vmem:[%s1 + $0x8] sm:$0xf]
        %v1224 = vld [vmem:[%s1 + $0xc] sm:$0xf]
        %v1225 = vld [vmem:[%s1 + $0x10] sm:$0xf]
        %v1226 = vld [vmem:[%s1 + $0x14] sm:$0xf]
        %v1227 = vld [vmem:[%s1 + $0x18] sm:$0xf]
        %v1228 = vld [vmem:[%s1 + $0x1c] sm:$0xf]
        %v1229 = vld [vmem:[%s1 + $0x20] sm:$0xf]
        %v1230 = vld [vmem:[%s1 + $0x24] sm:$0xf]
        %v1231 = vld [vmem:[%s1 + $0x28] sm:$0xf]
        %v1232 = vld [vmem:[%s1 + $0x2c] sm:$0xf]
        %v1233 = vld [vmem:[%s1 + $0x30] sm:$0xf]
        %v1234 = vld [vmem:[%s1 + $0x34] sm:$0xf]
        %v1235 = vld [vmem:[%s1 + $0x38] sm:$0xf]
        %v1236 = vld [vmem:[%s1 + $0x3c] sm:$0xf]
        %v1237 = vld [vmem:[%s1 + $0x40] sm:$0xf]
        %v1238 = vld [vmem:[%s1 + $0x44] sm:$0xf]
        %v1239 = vld [vmem:[%s1 + $0x48] sm:$0xf]
        %v1240 = vld [vmem:[%s1 + $0x4c] sm:$0xf]
        %v1241 = vld [vmem:[%s1 + $0x50] sm:$0xf]
        %v1242 = vld [vmem:[%s1 + $0x54] sm:$0xf]
        %v1243 = vld [vmem:[%s1 + $0x58] sm:$0xf]
        %v1244 = vld [vmem:[%s1 + $0x5c] sm:$0xf]
        %v1245 = vld [vmem:[%s1 + $0x60] sm:$0xf]
        %v1246 = vld [vmem:[%s1 + $0x64] sm:$0xf]
        %v1247 = vld [vmem:[%s1 + $0x68] sm:$0xf]
        %v1248 = vld [vmem:[%s1 + $0x6c] sm:$0xf]
        %v1249 = vld [vmem:[%s1 + $0x70] sm:$0xf]
        %v1250 = vld [vmem:[%s1 + $0x74] sm:$0xf]
        %v1251 = vld [vmem:[%s1 + $0x78] sm:$0xf]
        %v1252 = vld [vmem:[%s1 + $0x7c] sm:$0xf]
        %v1253 = vld [vmem:[%s1 + $0x80] sm:$0xf]
        %v1254 = vld [vmem:[%s1 + $0x84] sm:$0xf]
        %v1255 = vld [vmem:[%s1 + $0x88] sm:$0xf]
        %v1256 = vld [vmem:[%s1 + $0x8c] sm:$0xf]
        %v1257 = vld [vmem:[%s1 + $0x90] sm:$0xf]
        %v1258 = vld [vmem:[%s1 + $0x94] sm:$0xf]
        %v1259 = vld [vmem:[%s1 + $0x98] sm:$0xf]
        %v1260 = vld [vmem:[%s1 + $0x9c] sm:$0xf]
        %v1261 = vld [vmem:[%s1 + $0xa0] sm:$0xf]
        %v1262 = vld [vmem:[%s1 + $0xa4] sm:$0xf]
        %v1263 = vld [vmem:[%s1 + $0xa8] sm:$0xf]
        %v1264 = vld [vmem:[%s1 + $0xac] sm:$0xf]
        %v1265 = vld [vmem:[%s1 + $0xb0] sm:$0xf]
        %v1266 = vld [vmem:[%s1 + $0xb4] sm:$0xf]
        %v1267 = vld [vmem:[%s1 + $0xb8] sm:$0xf]
        %v1268 = vld [vmem:[%s1 + $0xbc] sm:$0xf]
        %v1269 = vld [vmem:[%s1 + $0xc0] sm:$0xf]
        %v1270 = vld [vmem:[%s1 + $0xc4] sm:$0xf]
        %v1271 = vld [vmem:[%s1 + $0xc8] sm:$0xf]
        %v1272 = vld [vmem:[%s1 + $0xcc] sm:$0xf]
        %v1273 = vld [vmem:[%s1 + $0xd0] sm:$0xf]
        %v1274 = vld [vmem:[%s1 + $0xd4] sm:$0xf]
        %v1275 = vld [vmem:[%s1 + $0xd8] sm:$0xf]
        %v1276 = vld [vmem:[%s1 + $0xdc] sm:$0xf]
        %v1277 = vld [vmem:[%s1 + $0xe0] sm:$0xf]
        %v1278 = vld [vmem:[%s1 + $0xe4] sm:$0xf]
        %v1279 = vld [vmem:[%s1 + $0xe8] sm:$0xf]
        %v1280 = vld [vmem:[%s1 + $0xec] sm:$0xf]
        %v1281 = vld [vmem:[%s1 + $0xf0] sm:$0xf]
        %v1282 = vld [vmem:[%s1 + $0xf4] sm:$0xf]
        %v1283 = vld [vmem:[%s1 + $0xf8] sm:$0xf]
        %v1284 = vld [vmem:[%s1 + $0xfc] sm:$0xf]
        %v1285 = vld [vmem:[%s2] sm:$0x1]
        %v1287 = vperm.slane %v1285, 0
        %v1353 = vunpack.c.l.b16 %v1221
        %v1354 = vunpack.c.l.b16 %v1222
        %v1355 = vunpack.c.l.b16 %v1223
        %v1356 = vunpack.c.l.b16 %v1224
        %v1357 = vunpack.c.l.b16 %v1225
        %v1358 = vunpack.c.l.b16 %v1226
        %v1359 = vunpack.c.l.b16 %v1227
        %v1360 = vunpack.c.l.b16 %v1228
        %v1361 = vunpack.c.l.b16 %v1229
        %v1362 = vunpack.c.l.b16 %v1230
        %v1363 = vunpack.c.l.b16 %v1231
        %v1364 = vunpack.c.l.b16 %v1232
        %v1365 = vunpack.c.l.b16 %v1233
        %v1366 = vunpack.c.l.b16 %v1234
        %v1367 = vunpack.c.l.b16 %v1235
        %v1368 = vunpack.c.l.b16 %v1236
        %v1369 = vunpack.c.l.b16 %v1237
        %v1370 = vunpack.c.l.b16 %v1238
        %v1371 = vunpack.c.l.b16 %v1239
        %v1372 = vunpack.c.l.b16 %v1240
        %v1373 = vunpack.c.l.b16 %v1241
        %v1374 = vunpack.c.l.b16 %v1242
        %v1375 = vunpack.c.l.b16 %v1243
        %v1376 = vunpack.c.l.b16 %v1244
        %v1377 = vunpack.c.l.b16 %v1245
        %v1378 = vunpack.c.l.b16 %v1246
        %v1379 = vunpack.c.l.b16 %v1247
        %v1380 = vunpack.c.l.b16 %v1248
        %v1381 = vunpack.c.l.b16 %v1249
        %v1382 = vunpack.c.l.b16 %v1250
        %v1383 = vunpack.c.l.b16 %v1251
        %v1384 = vunpack.c.l.b16 %v1252
        %v1385 = vunpack.c.l.b16 %v1253
        %v1386 = vunpack.c.l.b16 %v1254
        %v1387 = vunpack.c.l.b16 %v1255
        %v1388 = vunpack.c.l.b16 %v1256
        %v1389 = vunpack.c.l.b16 %v1257
        %v1390 = vunpack.c.l.b16 %v1258
        %v1391 = vunpack.c.l.b16 %v1259
        %v1392 = vunpack.c.l.b16 %v1260
        %v1393 = vunpack.c.l.b16 %v1261
        %v1394 = vunpack.c.l.b16 %v1262
        %v1395 = vunpack.c.l.b16 %v1263
        %v1396 = vunpack.c.l.b16 %v1264
        %v1397 = vunpack.c.l.b16 %v1265
        %v1398 = vunpack.c.l.b16 %v1266
        %v1399 = vunpack.c.l.b16 %v1267
        %v1400 = vunpack.c.l.b16 %v1268
        %v1401 = vunpack.c.l.b16 %v1269
        %v1402 = vunpack.c.l.b16 %v1270
        %v1403 = vunpack.c.l.b16 %v1271
        %v1404 = vunpack.c.l.b16 %v1272
        %v1405 = vunpack.c.l.b16 %v1273
        %v1406 = vunpack.c.l.b16 %v1274
        %v1407 = vunpack.c.l.b16 %v1275
        %v1408 = vunpack.c.l.b16 %v1276
        %v1409 = vunpack.c.l.b16 %v1277
        %v1410 = vunpack.c.l.b16 %v1278
        %v1411 = vunpack.c.l.b16 %v1279
        %v1412 = vunpack.c.l.b16 %v1280
        %v1413 = vunpack.c.l.b16 %v1281
        %v1414 = vunpack.c.l.b16 %v1282
        %v1415 = vunpack.c.l.b16 %v1283
        %v1416 = vunpack.c.l.b16 %v1284
        %v1417 = vpack.c.b16 %v1354, %v1353
        %v1418 = vpack.c.b16 %v1356, %v1355
        %v1419 = vpack.c.b16 %v1358, %v1357
        %v1420 = vpack.c.b16 %v1360, %v1359
        %v1421 = vpack.c.b16 %v1362, %v1361
        %v1422 = vpack.c.b16 %v1364, %v1363
        %v1423 = vpack.c.b16 %v1366, %v1365
        %v1424 = vpack.c.b16 %v1368, %v1367
        %v1425 = vpack.c.b16 %v1370, %v1369
        %v1426 = vpack.c.b16 %v1372, %v1371
        %v1427 = vpack.c.b16 %v1374, %v1373
        %v1428 = vpack.c.b16 %v1376, %v1375
        %v1429 = vpack.c.b16 %v1378, %v1377
        %v1430 = vpack.c.b16 %v1380, %v1379
        %v1431 = vpack.c.b16 %v1382, %v1381
        %v1432 = vpack.c.b16 %v1384, %v1383
        %v1433 = vpack.c.b16 %v1386, %v1385
        %v1434 = vpack.c.b16 %v1388, %v1387
        %v1435 = vpack.c.b16 %v1390, %v1389
        %v1436 = vpack.c.b16 %v1392, %v1391
        %v1437 = vpack.c.b16 %v1394, %v1393
        %v1438 = vpack.c.b16 %v1396, %v1395
        %v1439 = vpack.c.b16 %v1398, %v1397
        %v1440 = vpack.c.b16 %v1400, %v1399
        %v1441 = vpack.c.b16 %v1402, %v1401
        %v1442 = vpack.c.b16 %v1404, %v1403
        %v1443 = vpack.c.b16 %v1406, %v1405
        %v1444 = vpack.c.b16 %v1408, %v1407
        %v1445 = vpack.c.b16 %v1410, %v1409
        %v1446 = vpack.c.b16 %v1412, %v1411
        %v1447 = vpack.c.b16 %v1414, %v1413
        %v1448 = vpack.c.b16 %v1416, %v1415
        %1481 = vmatpush.bf16.msra.mxu0 %v1424
        %1482 = vmatpush.bf16.msra.mxu0 %v1423
        %1483 = vmatpush.bf16.msra.mxu0 %v1422
        %1484 = vmatpush.bf16.msra.mxu0 %v1421
        %1485 = vmatpush.bf16.msra.mxu0 %v1420
        %1486 = vmatpush.bf16.msra.mxu0 %v1419
        %1487 = vmatpush.bf16.msra.mxu0 %v1418
        %1488 = vmatpush.bf16.msra.mxu0 %v1417
        %1489 = vmatmul.bf16.gmra.mxu0 %v997
        %v1490 = vpop.f32.mrf.mxu0
        %v1491 = vadd.f32 %v1287, %v1490
        %v1492 = vpop.f32.mrf.mxu0
        %v1493 = vadd.f32 %v1287, %v1492
        %1494 = vmatmul.bf16.gmra.mxu0 %v999
        %v1495 = vpop.f32.mrf.mxu0
        %v1496 = vadd.f32 %v1287, %v1495
        %v1497 = vpop.f32.mrf.mxu0
        %v1498 = vadd.f32 %v1287, %v1497
        %1499 = vmatmul.bf16.gmra.mxu0 %v1001
        %v1500 = vpop.f32.mrf.mxu0
        %v1501 = vadd.f32 %v1287, %v1500
        %v1502 = vpop.f32.mrf.mxu0
        %v1503 = vadd.f32 %v1287, %v1502
        %1504 = vmatmul.bf16.gmra.mxu0 %v1003
        %v1505 = vpop.f32.mrf.mxu0
        %v1506 = vadd.f32 %v1287, %v1505
        %v1507 = vpop.f32.mrf.mxu0
        %v1508 = vadd.f32 %v1287, %v1507
        %1509 = vmatmul.bf16.gmra.mxu0 %v1005
        %v1510 = vpop.f32.mrf.mxu0
        %v1511 = vadd.f32 %v1287, %v1510
        %v1512 = vpop.f32.mrf.mxu0
        %v1513 = vadd.f32 %v1287, %v1512
        %1514 = vmatmul.bf16.gmra.mxu0 %v1007
        %v1515 = vpop.f32.mrf.mxu0
        %v1516 = vadd.f32 %v1287, %v1515
        %v1517 = vpop.f32.mrf.mxu0
        %v1518 = vadd.f32 %v1287, %v1517
        %1519 = vmatmul.bf16.gmra.mxu0 %v1009
        %v1520 = vpop.f32.mrf.mxu0
        %v1521 = vadd.f32 %v1287, %v1520
        %v1522 = vpop.f32.mrf.mxu0
        %v1523 = vadd.f32 %v1287, %v1522
        %1524 = vmatmul.bf16.gmra.mxu0 %v1011
        %v1525 = vpop.f32.mrf.mxu0
        %v1526 = vadd.f32 %v1287, %v1525
        %v1527 = vpop.f32.mrf.mxu0
        %v1528 = vadd.f32 %v1287, %v1527
        %1529 = vmatmul.bf16.gmra.mxu0 %v1013
        %v1530 = vpop.f32.mrf.mxu0
        %v1531 = vadd.f32 %v1287, %v1530
        %v1532 = vpop.f32.mrf.mxu0
        %v1533 = vadd.f32 %v1287, %v1532
        %1534 = vmatmul.bf16.gmra.mxu0 %v1015
        %v1535 = vpop.f32.mrf.mxu0
        %v1536 = vadd.f32 %v1287, %v1535
        %v1537 = vpop.f32.mrf.mxu0
        %v1538 = vadd.f32 %v1287, %v1537
        %1539 = vmatmul.bf16.gmra.mxu0 %v1017
        %v1540 = vpop.f32.mrf.mxu0
        %v1541 = vadd.f32 %v1287, %v1540
        %v1542 = vpop.f32.mrf.mxu0
        %v1543 = vadd.f32 %v1287, %v1542
        %1544 = vmatmul.bf16.gmra.mxu0 %v1019
        %v1545 = vpop.f32.mrf.mxu0
        %v1546 = vadd.f32 %v1287, %v1545
        %v1547 = vpop.f32.mrf.mxu0
        %v1548 = vadd.f32 %v1287, %v1547
        %1549 = vmatmul.bf16.gmra.mxu0 %v1021
        %v1550 = vpop.f32.mrf.mxu0
        %v1551 = vadd.f32 %v1287, %v1550
        %v1552 = vpop.f32.mrf.mxu0
        %v1553 = vadd.f32 %v1287, %v1552
        %1554 = vmatmul.bf16.gmra.mxu0 %v1023
        %v1555 = vpop.f32.mrf.mxu0
        %v1556 = vadd.f32 %v1287, %v1555
        %v1557 = vpop.f32.mrf.mxu0
        %v1558 = vadd.f32 %v1287, %v1557
        %1559 = vmatmul.bf16.gmra.mxu0 %v1025
        %v1560 = vpop.f32.mrf.mxu0
        %v1561 = vadd.f32 %v1287, %v1560
        %v1562 = vpop.f32.mrf.mxu0
        %v1563 = vadd.f32 %v1287, %v1562
        %1564 = vmatmul.bf16.gmra.mxu0 %v1027
        %v1565 = vpop.f32.mrf.mxu0
        %v1566 = vadd.f32 %v1287, %v1565
        %v1567 = vpop.f32.mrf.mxu0
        %v1568 = vadd.f32 %v1287, %v1567
        %1569 = vdwg.mxu0
        %1570 = vmatpush.bf16.msra.mxu0 %v1432
        %1571 = vmatpush.bf16.msra.mxu0 %v1431
        %1572 = vmatpush.bf16.msra.mxu0 %v1430
        %1573 = vmatpush.bf16.msra.mxu0 %v1429
        %1574 = vmatpush.bf16.msra.mxu0 %v1428
        %1575 = vmatpush.bf16.msra.mxu0 %v1427
        %1576 = vmatpush.bf16.msra.mxu0 %v1426
        %1577 = vmatpush.bf16.msra.mxu0 %v1425
        %1578 = vmatmul.bf16.gmra.mxu0 %v998
        %v1579 = vpop.f32.mrf.mxu0
        %v1580 = vadd.f32 %v1491, %v1579
        %v1581 = vpop.f32.mrf.mxu0
        %v1582 = vadd.f32 %v1493, %v1581
        %1583 = vmatmul.bf16.gmra.mxu0 %v1000
        %v1584 = vpop.f32.mrf.mxu0
        %v1585 = vadd.f32 %v1496, %v1584
        %v1586 = vpop.f32.mrf.mxu0
        %v1587 = vadd.f32 %v1498, %v1586
        %1588 = vmatmul.bf16.gmra.mxu0 %v1002
        %v1589 = vpop.f32.mrf.mxu0
        %v1590 = vadd.f32 %v1501, %v1589
        %v1591 = vpop.f32.mrf.mxu0
        %v1592 = vadd.f32 %v1503, %v1591
        %1593 = vmatmul.bf16.gmra.mxu0 %v1004
        %v1594 = vpop.f32.mrf.mxu0
        %v1595 = vadd.f32 %v1506, %v1594
        %v1596 = vpop.f32.mrf.mxu0
        %v1597 = vadd.f32 %v1508, %v1596
        %1598 = vmatmul.bf16.gmra.mxu0 %v1006
        %v1599 = vpop.f32.mrf.mxu0
        %v1600 = vadd.f32 %v1511, %v1599
        %v1601 = vpop.f32.mrf.mxu0
        %v1602 = vadd.f32 %v1513, %v1601
        %1603 = vmatmul.bf16.gmra.mxu0 %v1008
        %v1604 = vpop.f32.mrf.mxu0
        %v1605 = vadd.f32 %v1516, %v1604
        %v1606 = vpop.f32.mrf.mxu0
        %v1607 = vadd.f32 %v1518, %v1606
        %1608 = vmatmul.bf16.gmra.mxu0 %v1010
        %v1609 = vpop.f32.mrf.mxu0
        %v1610 = vadd.f32 %v1521, %v1609
        %v1611 = vpop.f32.mrf.mxu0
        %v1612 = vadd.f32 %v1523, %v1611
        %1613 = vmatmul.bf16.gmra.mxu0 %v1012
        %v1614 = vpop.f32.mrf.mxu0
        %v1615 = vadd.f32 %v1526, %v1614
        %v1616 = vpop.f32.mrf.mxu0
        %v1617 = vadd.f32 %v1528, %v1616
        %1618 = vmatmul.bf16.gmra.mxu0 %v1014
        %v1619 = vpop.f32.mrf.mxu0
        %v1620 = vadd.f32 %v1531, %v1619
        %v1621 = vpop.f32.mrf.mxu0
        %v1622 = vadd.f32 %v1533, %v1621
        %1623 = vmatmul.bf16.gmra.mxu0 %v1016
        %v1624 = vpop.f32.mrf.mxu0
        %v1625 = vadd.f32 %v1536, %v1624
        %v1626 = vpop.f32.mrf.mxu0
        %v1627 = vadd.f32 %v1538, %v1626
        %1628 = vmatmul.bf16.gmra.mxu0 %v1018
        %v1629 = vpop.f32.mrf.mxu0
        %v1630 = vadd.f32 %v1541, %v1629
        %v1631 = vpop.f32.mrf.mxu0
        %v1632 = vadd.f32 %v1543, %v1631
        %1633 = vmatmul.bf16.gmra.mxu0 %v1020
        %v1634 = vpop.f32.mrf.mxu0
        %v1635 = vadd.f32 %v1546, %v1634
        %v1636 = vpop.f32.mrf.mxu0
        %v1637 = vadd.f32 %v1548, %v1636
        %1638 = vmatmul.bf16.gmra.mxu0 %v1022
        %v1639 = vpop.f32.mrf.mxu0
        %v1640 = vadd.f32 %v1551, %v1639
        %v1641 = vpop.f32.mrf.mxu0
        %v1642 = vadd.f32 %v1553, %v1641
        %1643 = vmatmul.bf16.gmra.mxu0 %v1024
        %v1644 = vpop.f32.mrf.mxu0
        %v1645 = vadd.f32 %v1556, %v1644
        %v1646 = vpop.f32.mrf.mxu0
        %v1647 = vadd.f32 %v1558, %v1646
        %1648 = vmatmul.bf16.gmra.mxu0 %v1026
        %v1649 = vpop.f32.mrf.mxu0
        %v1650 = vadd.f32 %v1561, %v1649
        %v1651 = vpop.f32.mrf.mxu0
        %v1652 = vadd.f32 %v1563, %v1651
        %1653 = vmatmul.bf16.gmra.mxu0 %v1028
        %v1654 = vpop.f32.mrf.mxu0
        %v1655 = vadd.f32 %v1566, %v1654
        %v1656 = vpop.f32.mrf.mxu0
        %v1657 = vadd.f32 %v1568, %v1656
        %1658 = vdwg.mxu0
        %1659 = vmatpush.bf16.msra.mxu0 %v1440
        %1660 = vmatpush.bf16.msra.mxu0 %v1439
        %1661 = vmatpush.bf16.msra.mxu0 %v1438
        %1662 = vmatpush.bf16.msra.mxu0 %v1437
        %1663 = vmatpush.bf16.msra.mxu0 %v1436
        %1664 = vmatpush.bf16.msra.mxu0 %v1435
        %1665 = vmatpush.bf16.msra.mxu0 %v1434
        %1666 = vmatpush.bf16.msra.mxu0 %v1433
        %1667 = vmatmul.bf16.gmra.mxu0 %v1157
        %v1668 = vpop.f32.mrf.mxu0
        %v1669 = vadd.f32 %v1580, %v1668
        %v1670 = vpop.f32.mrf.mxu0
        %v1671 = vadd.f32 %v1582, %v1670
        %1672 = vmatmul.bf16.gmra.mxu0 %v1159
        %v1673 = vpop.f32.mrf.mxu0
        %v1674 = vadd.f32 %v1585, %v1673
        %v1675 = vpop.f32.mrf.mxu0
        %v1676 = vadd.f32 %v1587, %v1675
        %1677 = vmatmul.bf16.gmra.mxu0 %v1161
        %v1678 = vpop.f32.mrf.mxu0
        %v1679 = vadd.f32 %v1590, %v1678
        %v1680 = vpop.f32.mrf.mxu0
        %v1681 = vadd.f32 %v1592, %v1680
        %1682 = vmatmul.bf16.gmra.mxu0 %v1163
        %v1683 = vpop.f32.mrf.mxu0
        %v1684 = vadd.f32 %v1595, %v1683
        %v1685 = vpop.f32.mrf.mxu0
        %v1686 = vadd.f32 %v1597, %v1685
        %1687 = vmatmul.bf16.gmra.mxu0 %v1165
        %v1688 = vpop.f32.mrf.mxu0
        %v1689 = vadd.f32 %v1600, %v1688
        %v1690 = vpop.f32.mrf.mxu0
        %v1691 = vadd.f32 %v1602, %v1690
        %1692 = vmatmul.bf16.gmra.mxu0 %v1167
        %v1693 = vpop.f32.mrf.mxu0
        %v1694 = vadd.f32 %v1605, %v1693
        %v1695 = vpop.f32.mrf.mxu0
        %v1696 = vadd.f32 %v1607, %v1695
        %1697 = vmatmul.bf16.gmra.mxu0 %v1169
        %v1698 = vpop.f32.mrf.mxu0
        %v1699 = vadd.f32 %v1610, %v1698
        %v1700 = vpop.f32.mrf.mxu0
        %v1701 = vadd.f32 %v1612, %v1700
        %1702 = vmatmul.bf16.gmra.mxu0 %v1171
        %v1703 = vpop.f32.mrf.mxu0
        %v1704 = vadd.f32 %v1615, %v1703
        %v1705 = vpop.f32.mrf.mxu0
        %v1706 = vadd.f32 %v1617, %v1705
        %1707 = vmatmul.bf16.gmra.mxu0 %v1173
        %v1708 = vpop.f32.mrf.mxu0
        %v1709 = vadd.f32 %v1620, %v1708
        %v1710 = vpop.f32.mrf.mxu0
        %v1711 = vadd.f32 %v1622, %v1710
        %1712 = vmatmul.bf16.gmra.mxu0 %v1175
        %v1713 = vpop.f32.mrf.mxu0
        %v1714 = vadd.f32 %v1625, %v1713
        %v1715 = vpop.f32.mrf.mxu0
        %v1716 = vadd.f32 %v1627, %v1715
        %1717 = vmatmul.bf16.gmra.mxu0 %v1177
        %v1718 = vpop.f32.mrf.mxu0
        %v1719 = vadd.f32 %v1630, %v1718
        %v1720 = vpop.f32.mrf.mxu0
        %v1721 = vadd.f32 %v1632, %v1720
        %1722 = vmatmul.bf16.gmra.mxu0 %v1179
        %v1723 = vpop.f32.mrf.mxu0
        %v1724 = vadd.f32 %v1635, %v1723
        %v1725 = vpop.f32.mrf.mxu0
        %v1726 = vadd.f32 %v1637, %v1725
        %1727 = vmatmul.bf16.gmra.mxu0 %v1181
        %v1728 = vpop.f32.mrf.mxu0
        %v1729 = vadd.f32 %v1640, %v1728
        %v1730 = vpop.f32.mrf.mxu0
        %v1731 = vadd.f32 %v1642, %v1730
        %1732 = vmatmul.bf16.gmra.mxu0 %v1183
        %v1733 = vpop.f32.mrf.mxu0
        %v1734 = vadd.f32 %v1645, %v1733
        %v1735 = vpop.f32.mrf.mxu0
        %v1736 = vadd.f32 %v1647, %v1735
        %1737 = vmatmul.bf16.gmra.mxu0 %v1185
        %v1738 = vpop.f32.mrf.mxu0
        %v1739 = vadd.f32 %v1650, %v1738
        %v1740 = vpop.f32.mrf.mxu0
        %v1741 = vadd.f32 %v1652, %v1740
        %1742 = vmatmul.bf16.gmra.mxu0 %v1187
        %v1743 = vpop.f32.mrf.mxu0
        %v1744 = vadd.f32 %v1655, %v1743
        %v1745 = vpop.f32.mrf.mxu0
        %v1746 = vadd.f32 %v1657, %v1745
        %1747 = vdwg.mxu0
        %1748 = vmatpush.bf16.msra.mxu0 %v1448
        %1749 = vmatpush.bf16.msra.mxu0 %v1447
        %1750 = vmatpush.bf16.msra.mxu0 %v1446
        %1751 = vmatpush.bf16.msra.mxu0 %v1445
        %1752 = vmatpush.bf16.msra.mxu0 %v1444
        %1753 = vmatpush.bf16.msra.mxu0 %v1443
        %1754 = vmatpush.bf16.msra.mxu0 %v1442
        %1755 = vmatpush.bf16.msra.mxu0 %v1441
        %1756 = vmatmul.bf16.gmra.mxu0 %v1158
        %v1757 = vpop.f32.mrf.mxu0
        %v1758 = vadd.f32 %v1669, %v1757
        %v1759 = vpop.f32.mrf.mxu0
        %v1760 = vadd.f32 %v1671, %v1759
        %1761 = vmatmul.bf16.gmra.mxu0 %v1160
        %v1762 = vpop.f32.mrf.mxu0
        %v1763 = vadd.f32 %v1674, %v1762
        %v1764 = vpop.f32.mrf.mxu0
        %v1765 = vadd.f32 %v1676, %v1764
        %1766 = vmatmul.bf16.gmra.mxu0 %v1162
        %v1767 = vpop.f32.mrf.mxu0
        %v1768 = vadd.f32 %v1679, %v1767
        %v1769 = vpop.f32.mrf.mxu0
        %v1770 = vadd.f32 %v1681, %v1769
        %1771 = vmatmul.bf16.gmra.mxu0 %v1164
        %v1772 = vpop.f32.mrf.mxu0
        %v1773 = vadd.f32 %v1684, %v1772
        %v1774 = vpop.f32.mrf.mxu0
        %v1775 = vadd.f32 %v1686, %v1774
        %1776 = vmatmul.bf16.gmra.mxu0 %v1166
        %v1777 = vpop.f32.mrf.mxu0
        %v1778 = vadd.f32 %v1689, %v1777
        %v1779 = vpop.f32.mrf.mxu0
        %v1780 = vadd.f32 %v1691, %v1779
        %1781 = vmatmul.bf16.gmra.mxu0 %v1168
        %v1782 = vpop.f32.mrf.mxu0
        %v1783 = vadd.f32 %v1694, %v1782
        %v1784 = vpop.f32.mrf.mxu0
        %v1785 = vadd.f32 %v1696, %v1784
        %1786 = vmatmul.bf16.gmra.mxu0 %v1170
        %v1787 = vpop.f32.mrf.mxu0
        %v1788 = vadd.f32 %v1699, %v1787
        %v1789 = vpop.f32.mrf.mxu0
        %v1790 = vadd.f32 %v1701, %v1789
        %1791 = vmatmul.bf16.gmra.mxu0 %v1172
        %v1792 = vpop.f32.mrf.mxu0
        %v1793 = vadd.f32 %v1704, %v1792
        %v1794 = vpop.f32.mrf.mxu0
        %v1795 = vadd.f32 %v1706, %v1794
        %1796 = vmatmul.bf16.gmra.mxu0 %v1174
        %v1797 = vpop.f32.mrf.mxu0
        %v1798 = vadd.f32 %v1709, %v1797
        %v1799 = vpop.f32.mrf.mxu0
        %v1800 = vadd.f32 %v1711, %v1799
        %1801 = vmatmul.bf16.gmra.mxu0 %v1176
        %v1802 = vpop.f32.mrf.mxu0
        %v1803 = vadd.f32 %v1714, %v1802
        %v1804 = vpop.f32.mrf.mxu0
        %v1805 = vadd.f32 %v1716, %v1804
        %1806 = vmatmul.bf16.gmra.mxu0 %v1178
        %v1807 = vpop.f32.mrf.mxu0
        %v1808 = vadd.f32 %v1719, %v1807
        %v1809 = vpop.f32.mrf.mxu0
        %v1810 = vadd.f32 %v1721, %v1809
        %1811 = vmatmul.bf16.gmra.mxu0 %v1180
        %v1812 = vpop.f32.mrf.mxu0
        %v1813 = vadd.f32 %v1724, %v1812
        %v1814 = vpop.f32.mrf.mxu0
        %v1815 = vadd.f32 %v1726, %v1814
        %1816 = vmatmul.bf16.gmra.mxu0 %v1182
        %v1817 = vpop.f32.mrf.mxu0
        %v1818 = vadd.f32 %v1729, %v1817
        %v1819 = vpop.f32.mrf.mxu0
        %v1820 = vadd.f32 %v1731, %v1819
        %1821 = vmatmul.bf16.gmra.mxu0 %v1184
        %v1822 = vpop.f32.mrf.mxu0
        %v1823 = vadd.f32 %v1734, %v1822
        %v1824 = vpop.f32.mrf.mxu0
        %v1825 = vadd.f32 %v1736, %v1824
        %1826 = vmatmul.bf16.gmra.mxu0 %v1186
        %v1827 = vpop.f32.mrf.mxu0
        %v1828 = vadd.f32 %v1739, %v1827
        %v1829 = vpop.f32.mrf.mxu0
        %v1830 = vadd.f32 %v1741, %v1829
        %1831 = vmatmul.bf16.gmra.mxu0 %v1188
        %v1832 = vpop.f32.mrf.mxu0
        %v1833 = vadd.f32 %v1744, %v1832
        %v1834 = vpop.f32.mrf.mxu0
        %v1835 = vadd.f32 %v1746, %v1834
        %1836 = vdwg.mxu0
        %v1837 = vmax.f32 %v1758, 0.0
        %v1838 = vmax.f32 %v1760, 0.0
        %v1839 = vmax.f32 %v1763, 0.0
        %v1840 = vmax.f32 %v1765, 0.0
        %v1841 = vmax.f32 %v1768, 0.0
        %v1842 = vmax.f32 %v1770, 0.0
        %v1843 = vmax.f32 %v1773, 0.0
        %v1844 = vmax.f32 %v1775, 0.0
        %v1845 = vmax.f32 %v1778, 0.0
        %v1846 = vmax.f32 %v1780, 0.0
        %v1847 = vmax.f32 %v1783, 0.0
        %v1848 = vmax.f32 %v1785, 0.0
        %v1849 = vmax.f32 %v1788, 0.0
        %v1850 = vmax.f32 %v1790, 0.0
        %v1851 = vmax.f32 %v1793, 0.0
        %v1852 = vmax.f32 %v1795, 0.0
        %v1853 = vmax.f32 %v1798, 0.0
        %v1854 = vmax.f32 %v1800, 0.0
        %v1855 = vmax.f32 %v1803, 0.0
        %v1856 = vmax.f32 %v1805, 0.0
        %v1857 = vmax.f32 %v1808, 0.0
        %v1858 = vmax.f32 %v1810, 0.0
        %v1859 = vmax.f32 %v1813, 0.0
        %v1860 = vmax.f32 %v1815, 0.0
        %v1861 = vmax.f32 %v1818, 0.0
        %v1862 = vmax.f32 %v1820, 0.0
        %v1863 = vmax.f32 %v1823, 0.0
        %v1864 = vmax.f32 %v1825, 0.0
        %v1865 = vmax.f32 %v1828, 0.0
        %v1866 = vmax.f32 %v1830, 0.0
        %v1867 = vmax.f32 %v1833, 0.0
        %v1868 = vmax.f32 %v1835, 0.0
        %v1869 = vpack.c.bf16 %v1838, %v1837
        %v1870 = vpack.c.bf16 %v1840, %v1839
        %v1871 = vpack.c.bf16 %v1842, %v1841
        %v1872 = vpack.c.bf16 %v1844, %v1843
        %v1873 = vpack.c.bf16 %v1846, %v1845
        %v1874 = vpack.c.bf16 %v1848, %v1847
        %v1875 = vpack.c.bf16 %v1850, %v1849
        %v1876 = vpack.c.bf16 %v1852, %v1851
        %v1877 = vpack.c.bf16 %v1854, %v1853
        %v1878 = vpack.c.bf16 %v1856, %v1855
        %v1879 = vpack.c.bf16 %v1858, %v1857
        %v1880 = vpack.c.bf16 %v1860, %v1859
        %v1881 = vpack.c.bf16 %v1862, %v1861
        %v1882 = vpack.c.bf16 %v1864, %v1863
        %v1883 = vpack.c.bf16 %v1866, %v1865
        %v1884 = vpack.c.bf16 %v1868, %v1867
        %v1885 = vld [vmem:[%s3] sm:$0xff]
        %v1886 = vld [vmem:[%s3 + $0x8] sm:$0xff]
        %v1887 = vld [vmem:[%s3 + $0x10] sm:$0xff]
        %v1888 = vld [vmem:[%s3 + $0x18] sm:$0xff]
        %v1889 = vld [vmem:[%s3 + $0x20] sm:$0xff]
        %v1890 = vld [vmem:[%s3 + $0x28] sm:$0xff]
        %v1891 = vld [vmem:[%s3 + $0x30] sm:$0xff]
        %v1892 = vld [vmem:[%s3 + $0x38] sm:$0xff]
        %v1893 = vld [vmem:[%s3 + $0x40] sm:$0xff]
        %v1894 = vld [vmem:[%s3 + $0x48] sm:$0xff]
        %v1895 = vld [vmem:[%s3 + $0x50] sm:$0xff]
        %v1896 = vld [vmem:[%s3 + $0x58] sm:$0xff]
        %v1897 = vld [vmem:[%s3 + $0x60] sm:$0xff]
        %v1898 = vld [vmem:[%s3 + $0x68] sm:$0xff]
        %v1899 = vld [vmem:[%s3 + $0x70] sm:$0xff]
        %v1900 = vld [vmem:[%s3 + $0x78] sm:$0xff]
        %v1901 = vld [vmem:[%s4] sm:$0x3]
        %v1903 = vperm.slane %v1901, 0
        %v1904 = vperm.slane %v1901, 1
        %v1923 = vunpack.c.l.b16 %v1885
        %v1924 = vunpack.c.h.b16 %v1885
        %v1925 = vunpack.c.l.b16 %v1886
        %v1926 = vunpack.c.h.b16 %v1886
        %v1927 = vunpack.c.l.b16 %v1887
        %v1928 = vunpack.c.h.b16 %v1887
        %v1929 = vunpack.c.l.b16 %v1888
        %v1930 = vunpack.c.h.b16 %v1888
        %v1931 = vunpack.c.l.b16 %v1889
        %v1932 = vunpack.c.h.b16 %v1889
        %v1933 = vunpack.c.l.b16 %v1890
        %v1934 = vunpack.c.h.b16 %v1890
        %v1935 = vunpack.c.l.b16 %v1891
        %v1936 = vunpack.c.h.b16 %v1891
        %v1937 = vunpack.c.l.b16 %v1892
        %v1938 = vunpack.c.h.b16 %v1892
        %v1939 = vunpack.c.l.b16 %v1893
        %v1940 = vunpack.c.h.b16 %v1893
        %v1941 = vunpack.c.l.b16 %v1894
        %v1942 = vunpack.c.h.b16 %v1894
        %v1943 = vunpack.c.l.b16 %v1895
        %v1944 = vunpack.c.h.b16 %v1895
        %v1945 = vunpack.c.l.b16 %v1896
        %v1946 = vunpack.c.h.b16 %v1896
        %v1947 = vunpack.c.l.b16 %v1897
        %v1948 = vunpack.c.h.b16 %v1897
        %v1949 = vunpack.c.l.b16 %v1898
        %v1950 = vunpack.c.h.b16 %v1898
        %v1951 = vunpack.c.l.b16 %v1899
        %v1952 = vunpack.c.h.b16 %v1899
        %v1953 = vunpack.c.l.b16 %v1900
        %v1954 = vunpack.c.h.b16 %v1900
        %v1955 = vpack.c.b16 %v1925, %v1923
        %v1956 = vpack.c.b16 %v1926, %v1924
        %v1957 = vpack.c.b16 %v1929, %v1927
        %v1958 = vpack.c.b16 %v1930, %v1928
        %v1959 = vpack.c.b16 %v1933, %v1931
        %v1960 = vpack.c.b16 %v1934, %v1932
        %v1961 = vpack.c.b16 %v1937, %v1935
        %v1962 = vpack.c.b16 %v1938, %v1936
        %v1963 = vpack.c.b16 %v1941, %v1939
        %v1964 = vpack.c.b16 %v1942, %v1940
        %v1965 = vpack.c.b16 %v1945, %v1943
        %v1966 = vpack.c.b16 %v1946, %v1944
        %v1967 = vpack.c.b16 %v1949, %v1947
        %v1968 = vpack.c.b16 %v1950, %v1948
        %v1969 = vpack.c.b16 %v1953, %v1951
        %v1970 = vpack.c.b16 %v1954, %v1952
        %1987 = vmatpush.bf16.msra.mxu0 %v1969
        %1988 = vmatpush.bf16.msra.mxu0 %v1967
        %1989 = vmatpush.bf16.msra.mxu0 %v1965
        %1990 = vmatpush.bf16.msra.mxu0 %v1963
        %1991 = vmatpush.bf16.msra.mxu0 %v1961
        %1992 = vmatpush.bf16.msra.mxu0 %v1959
        %1993 = vmatpush.bf16.msra.mxu0 %v1957
        %1994 = vmatpush.bf16.msra.mxu0 %v1955
        %1995 = vmatmul.bf16.gmra.mxu0 %v1869
        %v1996 = vpop.f32.mrf.mxu0
        %v1997 = vadd.f32 %v1903, %v1996
        %v1998 = vpop.f32.mrf.mxu0
        %v1999 = vadd.f32 %v1903, %v1998
        %2000 = vmatmul.bf16.gmra.mxu0 %v1870
        %v2001 = vpop.f32.mrf.mxu0
        %v2002 = vadd.f32 %v1903, %v2001
        %v2003 = vpop.f32.mrf.mxu0
        %v2004 = vadd.f32 %v1903, %v2003
        %2005 = vmatmul.bf16.gmra.mxu0 %v1871
        %v2006 = vpop.f32.mrf.mxu0
        %v2007 = vadd.f32 %v1903, %v2006
        %v2008 = vpop.f32.mrf.mxu0
        %v2009 = vadd.f32 %v1903, %v2008
        %2010 = vmatmul.bf16.gmra.mxu0 %v1872
        %v2011 = vpop.f32.mrf.mxu0
        %v2012 = vadd.f32 %v1903, %v2011
        %v2013 = vpop.f32.mrf.mxu0
        %v2014 = vadd.f32 %v1903, %v2013
        %2015 = vmatmul.bf16.gmra.mxu0 %v1873
        %v2016 = vpop.f32.mrf.mxu0
        %v2017 = vadd.f32 %v1903, %v2016
        %v2018 = vpop.f32.mrf.mxu0
        %v2019 = vadd.f32 %v1903, %v2018
        %2020 = vmatmul.bf16.gmra.mxu0 %v1874
        %v2021 = vpop.f32.mrf.mxu0
        %v2022 = vadd.f32 %v1903, %v2021
        %v2023 = vpop.f32.mrf.mxu0
        %v2024 = vadd.f32 %v1903, %v2023
        %2025 = vmatmul.bf16.gmra.mxu0 %v1875
        %v2026 = vpop.f32.mrf.mxu0
        %v2027 = vadd.f32 %v1903, %v2026
        %v2028 = vpop.f32.mrf.mxu0
        %v2029 = vadd.f32 %v1903, %v2028
        %2030 = vmatmul.bf16.gmra.mxu0 %v1876
        %v2031 = vpop.f32.mrf.mxu0
        %v2032 = vadd.f32 %v1903, %v2031
        %v2033 = vpop.f32.mrf.mxu0
        %v2034 = vadd.f32 %v1903, %v2033
        %2035 = vmatmul.bf16.gmra.mxu0 %v1877
        %v2036 = vpop.f32.mrf.mxu0
        %v2037 = vadd.f32 %v1903, %v2036
        %v2038 = vpop.f32.mrf.mxu0
        %v2039 = vadd.f32 %v1903, %v2038
        %2040 = vmatmul.bf16.gmra.mxu0 %v1878
        %v2041 = vpop.f32.mrf.mxu0
        %v2042 = vadd.f32 %v1903, %v2041
        %v2043 = vpop.f32.mrf.mxu0
        %v2044 = vadd.f32 %v1903, %v2043
        %2045 = vmatmul.bf16.gmra.mxu0 %v1879
        %v2046 = vpop.f32.mrf.mxu0
        %v2047 = vadd.f32 %v1903, %v2046
        %v2048 = vpop.f32.mrf.mxu0
        %v2049 = vadd.f32 %v1903, %v2048
        %2050 = vmatmul.bf16.gmra.mxu0 %v1880
        %v2051 = vpop.f32.mrf.mxu0
        %v2052 = vadd.f32 %v1903, %v2051
        %v2053 = vpop.f32.mrf.mxu0
        %v2054 = vadd.f32 %v1903, %v2053
        %2055 = vmatmul.bf16.gmra.mxu0 %v1881
        %v2056 = vpop.f32.mrf.mxu0
        %v2057 = vadd.f32 %v1903, %v2056
        %v2058 = vpop.f32.mrf.mxu0
        %v2059 = vadd.f32 %v1903, %v2058
        %2060 = vmatmul.bf16.gmra.mxu0 %v1882
        %v2061 = vpop.f32.mrf.mxu0
        %v2062 = vadd.f32 %v1903, %v2061
        %v2063 = vpop.f32.mrf.mxu0
        %v2064 = vadd.f32 %v1903, %v2063
        %2065 = vmatmul.bf16.gmra.mxu0 %v1883
        %v2066 = vpop.f32.mrf.mxu0
        %v2067 = vadd.f32 %v1903, %v2066
        %v2068 = vpop.f32.mrf.mxu0
        %v2069 = vadd.f32 %v1903, %v2068
        %2070 = vmatmul.bf16.gmra.mxu0 %v1884
        %v2071 = vpop.f32.mrf.mxu0
        %v2072 = vadd.f32 %v1903, %v2071
        %v2073 = vpop.f32.mrf.mxu0
        %v2074 = vadd.f32 %v1903, %v2073
        %2075 = vdwg.mxu0
        %2076 = vmatpush.bf16.msra.mxu0 %v1970
        %2077 = vmatpush.bf16.msra.mxu0 %v1968
        %2078 = vmatpush.bf16.msra.mxu0 %v1966
        %2079 = vmatpush.bf16.msra.mxu0 %v1964
        %2080 = vmatpush.bf16.msra.mxu0 %v1962
        %2081 = vmatpush.bf16.msra.mxu0 %v1960
        %2082 = vmatpush.bf16.msra.mxu0 %v1958
        %2083 = vmatpush.bf16.msra.mxu0 %v1956
        %2084 = vmatmul.bf16.gmra.mxu0 %v1869
        %v2085 = vpop.f32.mrf.mxu0
        %v2086 = vadd.f32 %v1904, %v2085
        %v2087 = vpop.f32.mrf.mxu0
        %v2088 = vadd.f32 %v1904, %v2087
        %2089 = vmatmul.bf16.gmra.mxu0 %v1870
        %v2090 = vpop.f32.mrf.mxu0
        %v2091 = vadd.f32 %v1904, %v2090
        %v2092 = vpop.f32.mrf.mxu0
        %v2093 = vadd.f32 %v1904, %v2092
        %2094 = vmatmul.bf16.gmra.mxu0 %v1871
        %v2095 = vpop.f32.mrf.mxu0
        %v2096 = vadd.f32 %v1904, %v2095
        %v2097 = vpop.f32.mrf.mxu0
        %v2098 = vadd.f32 %v1904, %v2097
        %2099 = vmatmul.bf16.gmra.mxu0 %v1872
        %v2100 = vpop.f32.mrf.mxu0
        %v2101 = vadd.f32 %v1904, %v2100
        %v2102 = vpop.f32.mrf.mxu0
        %v2103 = vadd.f32 %v1904, %v2102
        %2104 = vmatmul.bf16.gmra.mxu0 %v1873
        %v2105 = vpop.f32.mrf.mxu0
        %v2106 = vadd.f32 %v1904, %v2105
        %v2107 = vpop.f32.mrf.mxu0
        %v2108 = vadd.f32 %v1904, %v2107
        %2109 = vmatmul.bf16.gmra.mxu0 %v1874
        %v2110 = vpop.f32.mrf.mxu0
        %v2111 = vadd.f32 %v1904, %v2110
        %v2112 = vpop.f32.mrf.mxu0
        %v2113 = vadd.f32 %v1904, %v2112
        %2114 = vmatmul.bf16.gmra.mxu0 %v1875
        %v2115 = vpop.f32.mrf.mxu0
        %v2116 = vadd.f32 %v1904, %v2115
        %v2117 = vpop.f32.mrf.mxu0
        %v2118 = vadd.f32 %v1904, %v2117
        %2119 = vmatmul.bf16.gmra.mxu0 %v1876
        %v2120 = vpop.f32.mrf.mxu0
        %v2121 = vadd.f32 %v1904, %v2120
        %v2122 = vpop.f32.mrf.mxu0
        %v2123 = vadd.f32 %v1904, %v2122
        %2124 = vmatmul.bf16.gmra.mxu0 %v1877
        %v2125 = vpop.f32.mrf.mxu0
        %v2126 = vadd.f32 %v1904, %v2125
        %v2127 = vpop.f32.mrf.mxu0
        %v2128 = vadd.f32 %v1904, %v2127
        %2129 = vmatmul.bf16.gmra.mxu0 %v1878
        %v2130 = vpop.f32.mrf.mxu0
        %v2131 = vadd.f32 %v1904, %v2130
        %v2132 = vpop.f32.mrf.mxu0
        %v2133 = vadd.f32 %v1904, %v2132
        %2134 = vmatmul.bf16.gmra.mxu0 %v1879
        %v2135 = vpop.f32.mrf.mxu0
        %v2136 = vadd.f32 %v1904, %v2135
        %v2137 = vpop.f32.mrf.mxu0
        %v2138 = vadd.f32 %v1904, %v2137
        %2139 = vmatmul.bf16.gmra.mxu0 %v1880
        %v2140 = vpop.f32.mrf.mxu0
        %v2141 = vadd.f32 %v1904, %v2140
        %v2142 = vpop.f32.mrf.mxu0
        %v2143 = vadd.f32 %v1904, %v2142
        %2144 = vmatmul.bf16.gmra.mxu0 %v1881
        %v2145 = vpop.f32.mrf.mxu0
        %v2146 = vadd.f32 %v1904, %v2145
        %v2147 = vpop.f32.mrf.mxu0
        %v2148 = vadd.f32 %v1904, %v2147
        %2149 = vmatmul.bf16.gmra.mxu0 %v1882
        %v2150 = vpop.f32.mrf.mxu0
        %v2151 = vadd.f32 %v1904, %v2150
        %v2152 = vpop.f32.mrf.mxu0
        %v2153 = vadd.f32 %v1904, %v2152
        %2154 = vmatmul.bf16.gmra.mxu0 %v1883
        %v2155 = vpop.f32.mrf.mxu0
        %v2156 = vadd.f32 %v1904, %v2155
        %v2157 = vpop.f32.mrf.mxu0
        %v2158 = vadd.f32 %v1904, %v2157
        %2159 = vmatmul.bf16.gmra.mxu0 %v1884
        %v2160 = vpop.f32.mrf.mxu0
        %v2161 = vadd.f32 %v1904, %v2160
        %v2162 = vpop.f32.mrf.mxu0
        %v2163 = vadd.f32 %v1904, %v2162
        %2164 = vdwg.mxu0
        %v2165 = vmax.f32 %v1997, %v2086
        %2166 = vmax.xlane.f32.xlu0 %v2165
        %v2167 = vpop.xlane.xlu0 %2166
        %v2168 = vmax.f32 %v1999, %v2088
        %2169 = vmax.xlane.f32.xlu0 %v2168
        %v2170 = vpop.xlane.xlu0 %2169
        %v2171 = vmax.f32 %v2002, %v2091
        %2172 = vmax.xlane.f32.xlu0 %v2171
        %v2173 = vpop.xlane.xlu0 %2172
        %v2174 = vmax.f32 %v2004, %v2093
        %2175 = vmax.xlane.f32.xlu0 %v2174
        %v2176 = vpop.xlane.xlu0 %2175
        %v2177 = vmax.f32 %v2007, %v2096
        %2178 = vmax.xlane.f32.xlu0 %v2177
        %v2179 = vpop.xlane.xlu0 %2178
        %v2180 = vmax.f32 %v2009, %v2098
        %2181 = vmax.xlane.f32.xlu0 %v2180
        %v2182 = vpop.xlane.xlu0 %2181
        %v2183 = vmax.f32 %v2012, %v2101
        %2184 = vmax.xlane.f32.xlu0 %v2183
        %v2185 = vpop.xlane.xlu0 %2184
        %v2186 = vmax.f32 %v2014, %v2103
        %2187 = vmax.xlane.f32.xlu0 %v2186
        %v2188 = vpop.xlane.xlu0 %2187
        %v2189 = vmax.f32 %v2017, %v2106
        %2190 = vmax.xlane.f32.xlu0 %v2189
        %v2191 = vpop.xlane.xlu0 %2190
        %v2192 = vmax.f32 %v2019, %v2108
        %2193 = vmax.xlane.f32.xlu0 %v2192
        %v2194 = vpop.xlane.xlu0 %2193
        %v2195 = vmax.f32 %v2022, %v2111
        %2196 = vmax.xlane.f32.xlu0 %v2195
        %v2197 = vpop.xlane.xlu0 %2196
        %v2198 = vmax.f32 %v2024, %v2113
        %2199 = vmax.xlane.f32.xlu0 %v2198
        %v2200 = vpop.xlane.xlu0 %2199
        %v2201 = vmax.f32 %v2027, %v2116
        %2202 = vmax.xlane.f32.xlu0 %v2201
        %v2203 = vpop.xlane.xlu0 %2202
        %v2204 = vmax.f32 %v2029, %v2118
        %2205 = vmax.xlane.f32.xlu0 %v2204
        %v2206 = vpop.xlane.xlu0 %2205
        %v2207 = vmax.f32 %v2032, %v2121
        %2208 = vmax.xlane.f32.xlu0 %v2207
        %v2209 = vpop.xlane.xlu0 %2208
        %v2210 = vmax.f32 %v2034, %v2123
        %2211 = vmax.xlane.f32.xlu0 %v2210
        %v2212 = vpop.xlane.xlu0 %2211
        %v2213 = vmax.f32 %v2037, %v2126
        %2214 = vmax.xlane.f32.xlu0 %v2213
        %v2215 = vpop.xlane.xlu0 %2214
        %v2216 = vmax.f32 %v2039, %v2128
        %2217 = vmax.xlane.f32.xlu0 %v2216
        %v2218 = vpop.xlane.xlu0 %2217
        %v2219 = vmax.f32 %v2042, %v2131
        %2220 = vmax.xlane.f32.xlu0 %v2219
        %v2221 = vpop.xlane.xlu0 %2220
        %v2222 = vmax.f32 %v2044, %v2133
        %2223 = vmax.xlane.f32.xlu0 %v2222
        %v2224 = vpop.xlane.xlu0 %2223
        %v2225 = vmax.f32 %v2047, %v2136
        %2226 = vmax.xlane.f32.xlu0 %v2225
        %v2227 = vpop.xlane.xlu0 %2226
        %v2228 = vmax.f32 %v2049, %v2138
        %2229 = vmax.xlane.f32.xlu0 %v2228
        %v2230 = vpop.xlane.xlu0 %2229
        %v2231 = vmax.f32 %v2052, %v2141
        %2232 = vmax.xlane.f32.xlu0 %v2231
        %v2233 = vpop.xlane.xlu0 %2232
        %v2234 = vmax.f32 %v2054, %v2143
        %2235 = vmax.xlane.f32.xlu0 %v2234
        %v2236 = vpop.xlane.xlu0 %2235
        %v2237 = vmax.f32 %v2057, %v2146
        %2238 = vmax.xlane.f32.xlu0 %v2237
        %v2239 = vpop.xlane.xlu0 %2238
        %v2240 = vmax.f32 %v2059, %v2148
        %2241 = vmax.xlane.f32.xlu0 %v2240
        %v2242 = vpop.xlane.xlu0 %2241
        %v2243 = vmax.f32 %v2062, %v2151
        %2244 = vmax.xlane.f32.xlu0 %v2243
        %v2245 = vpop.xlane.xlu0 %2244
        %v2246 = vmax.f32 %v2064, %v2153
        %2247 = vmax.xlane.f32.xlu0 %v2246
        %v2248 = vpop.xlane.xlu0 %2247
        %v2249 = vmax.f32 %v2067, %v2156
        %2250 = vmax.xlane.f32.xlu0 %v2249
        %v2251 = vpop.xlane.xlu0 %2250
        %v2252 = vmax.f32 %v2069, %v2158
        %2253 = vmax.xlane.f32.xlu0 %v2252
        %v2254 = vpop.xlane.xlu0 %2253
        %v2255 = vmax.f32 %v2072, %v2161
        %2256 = vmax.xlane.f32.xlu0 %v2255
        %v2257 = vpop.xlane.xlu0 %2256
        %v2258 = vmax.f32 %v2074, %v2163
        %2259 = vmax.xlane.f32.xlu0 %v2258
        %v2260 = vpop.xlane.xlu0 %2259
        %v2261 = vsub.f32 %v1997, %v2167
        %v2262 = vsub.f32 %v2086, %v2167
        %v2263 = vsub.f32 %v1999, %v2170
        %v2264 = vsub.f32 %v2088, %v2170
        %v2265 = vsub.f32 %v2002, %v2173
        %v2266 = vsub.f32 %v2091, %v2173
        %v2267 = vsub.f32 %v2004, %v2176
        %v2268 = vsub.f32 %v2093, %v2176
        %v2269 = vsub.f32 %v2007, %v2179
        %v2270 = vsub.f32 %v2096, %v2179
        %v2271 = vsub.f32 %v2009, %v2182
        %v2272 = vsub.f32 %v2098, %v2182
        %v2273 = vsub.f32 %v2012, %v2185
        %v2274 = vsub.f32 %v2101, %v2185
        %v2275 = vsub.f32 %v2014, %v2188
        %v2276 = vsub.f32 %v2103, %v2188
        %v2277 = vsub.f32 %v2017, %v2191
        %v2278 = vsub.f32 %v2106, %v2191
        %v2279 = vsub.f32 %v2019, %v2194
        %v2280 = vsub.f32 %v2108, %v2194
        %v2281 = vsub.f32 %v2022, %v2197
        %v2282 = vsub.f32 %v2111, %v2197
        %v2283 = vsub.f32 %v2024, %v2200
        %v2284 = vsub.f32 %v2113, %v2200
        %v2285 = vsub.f32 %v2027, %v2203
        %v2286 = vsub.f32 %v2116, %v2203
        %v2287 = vsub.f32 %v2029, %v2206
        %v2288 = vsub.f32 %v2118, %v2206
        %v2289 = vsub.f32 %v2032, %v2209
        %v2290 = vsub.f32 %v2121, %v2209
        %v2291 = vsub.f32 %v2034, %v2212
        %v2292 = vsub.f32 %v2123, %v2212
        %v2293 = vsub.f32 %v2037, %v2215
        %v2294 = vsub.f32 %v2126, %v2215
        %v2295 = vsub.f32 %v2039, %v2218
        %v2296 = vsub.f32 %v2128, %v2218
        %v2297 = vsub.f32 %v2042, %v2221
        %v2298 = vsub.f32 %v2131, %v2221
        %v2299 = vsub.f32 %v2044, %v2224
        %v2300 = vsub.f32 %v2133, %v2224
        %v2301 = vsub.f32 %v2047, %v2227
        %v2302 = vsub.f32 %v2136, %v2227
        %v2303 = vsub.f32 %v2049, %v2230
        %v2304 = vsub.f32 %v2138, %v2230
        %v2305 = vsub.f32 %v2052, %v2233
        %v2306 = vsub.f32 %v2141, %v2233
        %v2307 = vsub.f32 %v2054, %v2236
        %v2308 = vsub.f32 %v2143, %v2236
        %v2309 = vsub.f32 %v2057, %v2239
        %v2310 = vsub.f32 %v2146, %v2239
        %v2311 = vsub.f32 %v2059, %v2242
        %v2312 = vsub.f32 %v2148, %v2242
        %v2313 = vsub.f32 %v2062, %v2245
        %v2314 = vsub.f32 %v2151, %v2245
        %v2315 = vsub.f32 %v2064, %v2248
        %v2316 = vsub.f32 %v2153, %v2248
        %v2317 = vsub.f32 %v2067, %v2251
        %v2318 = vsub.f32 %v2156, %v2251
        %v2319 = vsub.f32 %v2069, %v2254
        %v2320 = vsub.f32 %v2158, %v2254
        %v2321 = vsub.f32 %v2072, %v2257
        %v2322 = vsub.f32 %v2161, %v2257
        %v2323 = vsub.f32 %v2074, %v2260
        %v2324 = vsub.f32 %v2163, %v2260
        %v2325 = vmul.f32 %v2261, 1.442695
        %v2326 = vpow.pop %v2325
        %v2327 = vmul.f32 %v2262, 1.442695
        %v2328 = vpow.pop %v2327
        %v2329 = vmul.f32 %v2263, 1.442695
        %v2330 = vpow.pop %v2329
        %v2331 = vmul.f32 %v2264, 1.442695
        %v2332 = vpow.pop %v2331
        %v2333 = vmul.f32 %v2265, 1.442695
        %v2334 = vpow.pop %v2333
        %v2335 = vmul.f32 %v2266, 1.442695
        %v2336 = vpow.pop %v2335
        %v2337 = vmul.f32 %v2267, 1.442695
        %v2338 = vpow.pop %v2337
        %v2339 = vmul.f32 %v2268, 1.442695
        %v2340 = vpow.pop %v2339
        %v2341 = vmul.f32 %v2269, 1.442695
        %v2342 = vpow.pop %v2341
        %v2343 = vmul.f32 %v2270, 1.442695
        %v2344 = vpow.pop %v2343
        %v2345 = vmul.f32 %v2271, 1.442695
        %v2346 = vpow.pop %v2345
        %v2347 = vmul.f32 %v2272, 1.442695
        %v2348 = vpow.pop %v2347
        %v2349 = vmul.f32 %v2273, 1.442695
        %v2350 = vpow.pop %v2349
        %v2351 = vmul.f32 %v2274, 1.442695
        %v2352 = vpow.pop %v2351
        %v2353 = vmul.f32 %v2275, 1.442695
        %v2354 = vpow.pop %v2353
        %v2355 = vmul.f32 %v2276, 1.442695
        %v2356 = vpow.pop %v2355
        %v2357 = vmul.f32 %v2277, 1.442695
        %v2358 = vpow.pop %v2357
        %v2359 = vmul.f32 %v2278, 1.442695
        %v2360 = vpow.pop %v2359
        %v2361 = vmul.f32 %v2279, 1.442695
        %v2362 = vpow.pop %v2361
        %v2363 = vmul.f32 %v2280, 1.442695
        %v2364 = vpow.pop %v2363
        %v2365 = vmul.f32 %v2281, 1.442695
        %v2366 = vpow.pop %v2365
        %v2367 = vmul.f32 %v2282, 1.442695
        %v2368 = vpow.pop %v2367
        %v2369 = vmul.f32 %v2283, 1.442695
        %v2370 = vpow.pop %v2369
        %v2371 = vmul.f32 %v2284, 1.442695
        %v2372 = vpow.pop %v2371
        %v2373 = vmul.f32 %v2285, 1.442695
        %v2374 = vpow.pop %v2373
        %v2375 = vmul.f32 %v2286, 1.442695
        %v2376 = vpow.pop %v2375
        %v2377 = vmul.f32 %v2287, 1.442695
        %v2378 = vpow.pop %v2377
        %v2379 = vmul.f32 %v2288, 1.442695
        %v2380 = vpow.pop %v2379
        %v2381 = vmul.f32 %v2289, 1.442695
        %v2382 = vpow.pop %v2381
        %v2383 = vmul.f32 %v2290, 1.442695
        %v2384 = vpow.pop %v2383
        %v2385 = vmul.f32 %v2291, 1.442695
        %v2386 = vpow.pop %v2385
        %v2387 = vmul.f32 %v2292, 1.442695
        %v2388 = vpow.pop %v2387
        %v2389 = vmul.f32 %v2293, 1.442695
        %v2390 = vpow.pop %v2389
        %v2391 = vmul.f32 %v2294, 1.442695
        %v2392 = vpow.pop %v2391
        %v2393 = vmul.f32 %v2295, 1.442695
        %v2394 = vpow.pop %v2393
        %v2395 = vmul.f32 %v2296, 1.442695
        %v2396 = vpow.pop %v2395
        %v2397 = vmul.f32 %v2297, 1.442695
        %v2398 = vpow.pop %v2397
        %v2399 = vmul.f32 %v2298, 1.442695
        %v2400 = vpow.pop %v2399
        %v2401 = vmul.f32 %v2299, 1.442695
        %v2402 = vpow.pop %v2401
        %v2403 = vmul.f32 %v2300, 1.442695
        %v2404 = vpow.pop %v2403
        %v2405 = vmul.f32 %v2301, 1.442695
        %v2406 = vpow.pop %v2405
        %v2407 = vmul.f32 %v2302, 1.442695
        %v2408 = vpow.pop %v2407
        %v2409 = vmul.f32 %v2303, 1.442695
        %v2410 = vpow.pop %v2409
        %v2411 = vmul.f32 %v2304, 1.442695
        %v2412 = vpow.pop %v2411
        %v2413 = vmul.f32 %v2305, 1.442695
        %v2414 = vpow.pop %v2413
        %v2415 = vmul.f32 %v2306, 1.442695
        %v2416 = vpow.pop %v2415
        %v2417 = vmul.f32 %v2307, 1.442695
        %v2418 = vpow.pop %v2417
        %v2419 = vmul.f32 %v2308, 1.442695
        %v2420 = vpow.pop %v2419
        %v2421 = vmul.f32 %v2309, 1.442695
        %v2422 = vpow.pop %v2421
        %v2423 = vmul.f32 %v2310, 1.442695
        %v2424 = vpow.pop %v2423
        %v2425 = vmul.f32 %v2311, 1.442695
        %v2426 = vpow.pop %v2425
        %v2427 = vmul.f32 %v2312, 1.442695
        %v2428 = vpow.pop %v2427
        %v2429 = vmul.f32 %v2313, 1.442695
        %v2430 = vpow.pop %v2429
        %v2431 = vmul.f32 %v2314, 1.442695
        %v2432 = vpow.pop %v2431
        %v2433 = vmul.f32 %v2315, 1.442695
        %v2434 = vpow.pop %v2433
        %v2435 = vmul.f32 %v2316, 1.442695
        %v2436 = vpow.pop %v2435
        %v2437 = vmul.f32 %v2317, 1.442695
        %v2438 = vpow.pop %v2437
        %v2439 = vmul.f32 %v2318, 1.442695
        %v2440 = vpow.pop %v2439
        %v2441 = vmul.f32 %v2319, 1.442695
        %v2442 = vpow.pop %v2441
        %v2443 = vmul.f32 %v2320, 1.442695
        %v2444 = vpow.pop %v2443
        %v2445 = vmul.f32 %v2321, 1.442695
        %v2446 = vpow.pop %v2445
        %v2447 = vmul.f32 %v2322, 1.442695
        %v2448 = vpow.pop %v2447
        %v2449 = vmul.f32 %v2323, 1.442695
        %v2450 = vpow.pop %v2449
        %v2451 = vmul.f32 %v2324, 1.442695
        %v2452 = vpow.pop %v2451
        %v2453 = vadd.f32 %v2326, %v2328
        %2454 = vadd.xlane.f32.xlu0 %v2453
        %v2455 = vpop.xlane.xlu0 %2454
        %v2456 = vadd.f32 %v2330, %v2332
        %2457 = vadd.xlane.f32.xlu0 %v2456
        %v2458 = vpop.xlane.xlu0 %2457
        %v2459 = vadd.f32 %v2334, %v2336
        %2460 = vadd.xlane.f32.xlu0 %v2459
        %v2461 = vpop.xlane.xlu0 %2460
        %v2462 = vadd.f32 %v2338, %v2340
        %2463 = vadd.xlane.f32.xlu0 %v2462
        %v2464 = vpop.xlane.xlu0 %2463
        %v2465 = vadd.f32 %v2342, %v2344
        %2466 = vadd.xlane.f32.xlu0 %v2465
        %v2467 = vpop.xlane.xlu0 %2466
        %v2468 = vadd.f32 %v2346, %v2348
        %2469 = vadd.xlane.f32.xlu0 %v2468
        %v2470 = vpop.xlane.xlu0 %2469
        %v2471 = vadd.f32 %v2350, %v2352
        %2472 = vadd.xlane.f32.xlu0 %v2471
        %v2473 = vpop.xlane.xlu0 %2472
        %v2474 = vadd.f32 %v2354, %v2356
        %2475 = vadd.xlane.f32.xlu0 %v2474
        %v2476 = vpop.xlane.xlu0 %2475
        %v2477 = vadd.f32 %v2358, %v2360
        %2478 = vadd.xlane.f32.xlu0 %v2477
        %v2479 = vpop.xlane.xlu0 %2478
        %v2480 = vadd.f32 %v2362, %v2364
        %2481 = vadd.xlane.f32.xlu0 %v2480
        %v2482 = vpop.xlane.xlu0 %2481
        %v2483 = vadd.f32 %v2366, %v2368
        %2484 = vadd.xlane.f32.xlu0 %v2483
        %v2485 = vpop.xlane.xlu0 %2484
        %v2486 = vadd.f32 %v2370, %v2372
        %2487 = vadd.xlane.f32.xlu0 %v2486
        %v2488 = vpop.xlane.xlu0 %2487
        %v2489 = vadd.f32 %v2374, %v2376
        %2490 = vadd.xlane.f32.xlu0 %v2489
        %v2491 = vpop.xlane.xlu0 %2490
        %v2492 = vadd.f32 %v2378, %v2380
        %2493 = vadd.xlane.f32.xlu0 %v2492
        %v2494 = vpop.xlane.xlu0 %2493
        %v2495 = vadd.f32 %v2382, %v2384
        %2496 = vadd.xlane.f32.xlu0 %v2495
        %v2497 = vpop.xlane.xlu0 %2496
        %v2498 = vadd.f32 %v2386, %v2388
        %2499 = vadd.xlane.f32.xlu0 %v2498
        %v2500 = vpop.xlane.xlu0 %2499
        %v2501 = vadd.f32 %v2390, %v2392
        %2502 = vadd.xlane.f32.xlu0 %v2501
        %v2503 = vpop.xlane.xlu0 %2502
        %v2504 = vadd.f32 %v2394, %v2396
        %2505 = vadd.xlane.f32.xlu0 %v2504
        %v2506 = vpop.xlane.xlu0 %2505
        %v2507 = vadd.f32 %v2398, %v2400
        %2508 = vadd.xlane.f32.xlu0 %v2507
        %v2509 = vpop.xlane.xlu0 %2508
        %v2510 = vadd.f32 %v2402, %v2404
        %2511 = vadd.xlane.f32.xlu0 %v2510
        %v2512 = vpop.xlane.xlu0 %2511
        %v2513 = vadd.f32 %v2406, %v2408
        %2514 = vadd.xlane.f32.xlu0 %v2513
        %v2515 = vpop.xlane.xlu0 %2514
        %v2516 = vadd.f32 %v2410, %v2412
        %2517 = vadd.xlane.f32.xlu0 %v2516
        %v2518 = vpop.xlane.xlu0 %2517
        %v2519 = vadd.f32 %v2414, %v2416
        %2520 = vadd.xlane.f32.xlu0 %v2519
        %v2521 = vpop.xlane.xlu0 %2520
        %v2522 = vadd.f32 %v2418, %v2420
        %2523 = vadd.xlane.f32.xlu0 %v2522
        %v2524 = vpop.xlane.xlu0 %2523
        %v2525 = vadd.f32 %v2422, %v2424
        %2526 = vadd.xlane.f32.xlu0 %v2525
        %v2527 = vpop.xlane.xlu0 %2526
        %v2528 = vadd.f32 %v2426, %v2428
        %2529 = vadd.xlane.f32.xlu0 %v2528
        %v2530 = vpop.xlane.xlu0 %2529
        %v2531 = vadd.f32 %v2430, %v2432
        %2532 = vadd.xlane.f32.xlu0 %v2531
        %v2533 = vpop.xlane.xlu0 %2532
        %v2534 = vadd.f32 %v2434, %v2436
        %2535 = vadd.xlane.f32.xlu0 %v2534
        %v2536 = vpop.xlane.xlu0 %2535
        %v2537 = vadd.f32 %v2438, %v2440
        %2538 = vadd.xlane.f32.xlu0 %v2537
        %v2539 = vpop.xlane.xlu0 %2538
        %v2540 = vadd.f32 %v2442, %v2444
        %2541 = vadd.xlane.f32.xlu0 %v2540
        %v2542 = vpop.xlane.xlu0 %2541
        %v2543 = vadd.f32 %v2446, %v2448
        %2544 = vadd.xlane.f32.xlu0 %v2543
        %v2545 = vpop.xlane.xlu0 %2544
        %v2546 = vadd.f32 %v2450, %v2452
        %2547 = vadd.xlane.f32.xlu0 %v2546
        %v2548 = vpop.xlane.xlu0 %2547
        %v2549 = vlog2.pop %v2455
        %v2550 = vmul.f32 %v2549, 0.6931472
        %v2551 = vlog2.pop %v2458
        %v2552 = vmul.f32 %v2551, 0.6931472
        %v2553 = vlog2.pop %v2461
        %v2554 = vmul.f32 %v2553, 0.6931472
        %v2555 = vlog2.pop %v2464
        %v2556 = vmul.f32 %v2555, 0.6931472
        %v2557 = vlog2.pop %v2467
        %v2558 = vmul.f32 %v2557, 0.6931472
        %v2559 = vlog2.pop %v2470
        %v2560 = vmul.f32 %v2559, 0.6931472
        %v2561 = vlog2.pop %v2473
        %v2562 = vmul.f32 %v2561, 0.6931472
        %v2563 = vlog2.pop %v2476
        %v2564 = vmul.f32 %v2563, 0.6931472
        %v2565 = vlog2.pop %v2479
        %v2566 = vmul.f32 %v2565, 0.6931472
        %v2567 = vlog2.pop %v2482
        %v2568 = vmul.f32 %v2567, 0.6931472
        %v2569 = vlog2.pop %v2485
        %v2570 = vmul.f32 %v2569, 0.6931472
        %v2571 = vlog2.pop %v2488
        %v2572 = vmul.f32 %v2571, 0.6931472
        %v2573 = vlog2.pop %v2491
        %v2574 = vmul.f32 %v2573, 0.6931472
        %v2575 = vlog2.pop %v2494
        %v2576 = vmul.f32 %v2575, 0.6931472
        %v2577 = vlog2.pop %v2497
        %v2578 = vmul.f32 %v2577, 0.6931472
        %v2579 = vlog2.pop %v2500
        %v2580 = vmul.f32 %v2579, 0.6931472
        %v2581 = vlog2.pop %v2503
        %v2582 = vmul.f32 %v2581, 0.6931472
        %v2583 = vlog2.pop %v2506
        %v2584 = vmul.f32 %v2583, 0.6931472
        %v2585 = vlog2.pop %v2509
        %v2586 = vmul.f32 %v2585, 0.6931472
        %v2587 = vlog2.pop %v2512
        %v2588 = vmul.f32 %v2587, 0.6931472
        %v2589 = vlog2.pop %v2515
        %v2590 = vmul.f32 %v2589, 0.6931472
        %v2591 = vlog2.pop %v2518
        %v2592 = vmul.f32 %v2591, 0.6931472
        %v2593 = vlog2.pop %v2521
        %v2594 = vmul.f32 %v2593, 0.6931472
        %v2595 = vlog2.pop %v2524
        %v2596 = vmul.f32 %v2595, 0.6931472
        %v2597 = vlog2.pop %v2527
        %v2598 = vmul.f32 %v2597, 0.6931472
        %v2599 = vlog2.pop %v2530
        %v2600 = vmul.f32 %v2599, 0.6931472
        %v2601 = vlog2.pop %v2533
        %v2602 = vmul.f32 %v2601, 0.6931472
        %v2603 = vlog2.pop %v2536
        %v2604 = vmul.f32 %v2603, 0.6931472
        %v2605 = vlog2.pop %v2539
        %v2606 = vmul.f32 %v2605, 0.6931472
        %v2607 = vlog2.pop %v2542
        %v2608 = vmul.f32 %v2607, 0.6931472
        %v2609 = vlog2.pop %v2545
        %v2610 = vmul.f32 %v2609, 0.6931472
        %v2611 = vlog2.pop %v2548
        %v2612 = vmul.f32 %v2611, 0.6931472
        %v2613 = vsub.f32 %v2261, %v2550
        %v2614 = vsub.f32 %v2262, %v2550
        %v2615 = vsub.f32 %v2263, %v2552
        %v2616 = vsub.f32 %v2264, %v2552
        %v2617 = vsub.f32 %v2265, %v2554
        %v2618 = vsub.f32 %v2266, %v2554
        %v2619 = vsub.f32 %v2267, %v2556
        %v2620 = vsub.f32 %v2268, %v2556
        %v2621 = vsub.f32 %v2269, %v2558
        %v2622 = vsub.f32 %v2270, %v2558
        %v2623 = vsub.f32 %v2271, %v2560
        %v2624 = vsub.f32 %v2272, %v2560
        %v2625 = vsub.f32 %v2273, %v2562
        %v2626 = vsub.f32 %v2274, %v2562
        %v2627 = vsub.f32 %v2275, %v2564
        %v2628 = vsub.f32 %v2276, %v2564
        %v2629 = vsub.f32 %v2277, %v2566
        %v2630 = vsub.f32 %v2278, %v2566
        %v2631 = vsub.f32 %v2279, %v2568
        %v2632 = vsub.f32 %v2280, %v2568
        %v2633 = vsub.f32 %v2281, %v2570
        %v2634 = vsub.f32 %v2282, %v2570
        %v2635 = vsub.f32 %v2283, %v2572
        %v2636 = vsub.f32 %v2284, %v2572
        %v2637 = vsub.f32 %v2285, %v2574
        %v2638 = vsub.f32 %v2286, %v2574
        %v2639 = vsub.f32 %v2287, %v2576
        %v2640 = vsub.f32 %v2288, %v2576
        %v2641 = vsub.f32 %v2289, %v2578
        %v2642 = vsub.f32 %v2290, %v2578
        %v2643 = vsub.f32 %v2291, %v2580
        %v2644 = vsub.f32 %v2292, %v2580
        %v2645 = vsub.f32 %v2293, %v2582
        %v2646 = vsub.f32 %v2294, %v2582
        %v2647 = vsub.f32 %v2295, %v2584
        %v2648 = vsub.f32 %v2296, %v2584
        %v2649 = vsub.f32 %v2297, %v2586
        %v2650 = vsub.f32 %v2298, %v2586
        %v2651 = vsub.f32 %v2299, %v2588
        %v2652 = vsub.f32 %v2300, %v2588
        %v2653 = vsub.f32 %v2301, %v2590
        %v2654 = vsub.f32 %v2302, %v2590
        %v2655 = vsub.f32 %v2303, %v2592
        %v2656 = vsub.f32 %v2304, %v2592
        %v2657 = vsub.f32 %v2305, %v2594
        %v2658 = vsub.f32 %v2306, %v2594
        %v2659 = vsub.f32 %v2307, %v2596
        %v2660 = vsub.f32 %v2308, %v2596
        %v2661 = vsub.f32 %v2309, %v2598
        %v2662 = vsub.f32 %v2310, %v2598
        %v2663 = vsub.f32 %v2311, %v2600
        %v2664 = vsub.f32 %v2312, %v2600
        %v2665 = vsub.f32 %v2313, %v2602
        %v2666 = vsub.f32 %v2314, %v2602
        %v2667 = vsub.f32 %v2315, %v2604
        %v2668 = vsub.f32 %v2316, %v2604
        %v2669 = vsub.f32 %v2317, %v2606
        %v2670 = vsub.f32 %v2318, %v2606
        %v2671 = vsub.f32 %v2319, %v2608
        %v2672 = vsub.f32 %v2320, %v2608
        %v2673 = vsub.f32 %v2321, %v2610
        %v2674 = vsub.f32 %v2322, %v2610
        %v2675 = vsub.f32 %v2323, %v2612
        %v2676 = vsub.f32 %v2324, %v2612
        %2677 = vst [vmem:[%s218] sm:$0xff] %v2613
        %2678 = vst [vmem:[%s218 + $0x8] sm:$0xff] %v2614
        %2679 = vst [vmem:[%s218 + $0x10] sm:$0xff] %v2615
        %2680 = vst [vmem:[%s218 + $0x18] sm:$0xff] %v2616
        %2681 = vst [vmem:[%s218 + $0x20] sm:$0xff] %v2617
        %2682 = vst [vmem:[%s218 + $0x28] sm:$0xff] %v2618
        %2683 = vst [vmem:[%s218 + $0x30] sm:$0xff] %v2619
        %2684 = vst [vmem:[%s218 + $0x38] sm:$0xff] %v2620
        %2685 = vst [vmem:[%s218 + $0x40] sm:$0xff] %v2621
        %2686 = vst [vmem:[%s218 + $0x48] sm:$0xff] %v2622
        %2687 = vst [vmem:[%s218 + $0x50] sm:$0xff] %v2623
        %2688 = vst [vmem:[%s218 + $0x58] sm:$0xff] %v2624
        %2689 = vst [vmem:[%s218 + $0x60] sm:$0xff] %v2625
        %2690 = vst [vmem:[%s218 + $0x68] sm:$0xff] %v2626
        %2691 = vst [vmem:[%s218 + $0x70] sm:$0xff] %v2627
        %2692 = vst [vmem:[%s218 + $0x78] sm:$0xff] %v2628
        %2693 = vst [vmem:[%s218 + $0x80] sm:$0xff] %v2629
        %2694 = vst [vmem:[%s218 + $0x88] sm:$0xff] %v2630
        %2695 = vst [vmem:[%s218 + $0x90] sm:$0xff] %v2631
        %2696 = vst [vmem:[%s218 + $0x98] sm:$0xff] %v2632
        %2697 = vst [vmem:[%s218 + $0xa0] sm:$0xff] %v2633
        %2698 = vst [vmem:[%s218 + $0xa8] sm:$0xff] %v2634
        %2699 = vst [vmem:[%s218 + $0xb0] sm:$0xff] %v2635
        %2700 = vst [vmem:[%s218 + $0xb8] sm:$0xff] %v2636
        %2701 = vst [vmem:[%s218 + $0xc0] sm:$0xff] %v2637
        %2702 = vst [vmem:[%s218 + $0xc8] sm:$0xff] %v2638
        %2703 = vst [vmem:[%s218 + $0xd0] sm:$0xff] %v2639
        %2704 = vst [vmem:[%s218 + $0xd8] sm:$0xff] %v2640
        %2705 = vst [vmem:[%s218 + $0xe0] sm:$0xff] %v2641
        %2706 = vst [vmem:[%s218 + $0xe8] sm:$0xff] %v2642
        %2707 = vst [vmem:[%s218 + $0xf0] sm:$0xff] %v2643
        %2708 = vst [vmem:[%s218 + $0xf8] sm:$0xff] %v2644
        %2709 = vst [vmem:[%s218 + $0x100] sm:$0xff] %v2645
        %2710 = vst [vmem:[%s218 + $0x108] sm:$0xff] %v2646
        %2711 = vst [vmem:[%s218 + $0x110] sm:$0xff] %v2647
        %2712 = vst [vmem:[%s218 + $0x118] sm:$0xff] %v2648
        %2713 = vst [vmem:[%s218 + $0x120] sm:$0xff] %v2649
        %2714 = vst [vmem:[%s218 + $0x128] sm:$0xff] %v2650
        %2715 = vst [vmem:[%s218 + $0x130] sm:$0xff] %v2651
        %2716 = vst [vmem:[%s218 + $0x138] sm:$0xff] %v2652
        %2717 = vst [vmem:[%s218 + $0x140] sm:$0xff] %v2653
        %2718 = vst [vmem:[%s218 + $0x148] sm:$0xff] %v2654
        %2719 = vst [vmem:[%s218 + $0x150] sm:$0xff] %v2655
        %2720 = vst [vmem:[%s218 + $0x158] sm:$0xff] %v2656
        %2721 = vst [vmem:[%s218 + $0x160] sm:$0xff] %v2657
        %2722 = vst [vmem:[%s218 + $0x168] sm:$0xff] %v2658
        %2723 = vst [vmem:[%s218 + $0x170] sm:$0xff] %v2659
        %2724 = vst [vmem:[%s218 + $0x178] sm:$0xff] %v2660
        %2725 = vst [vmem:[%s218 + $0x180] sm:$0xff] %v2661
        %2726 = vst [vmem:[%s218 + $0x188] sm:$0xff] %v2662
        %2727 = vst [vmem:[%s218 + $0x190] sm:$0xff] %v2663
        %2728 = vst [vmem:[%s218 + $0x198] sm:$0xff] %v2664
        %2729 = vst [vmem:[%s218 + $0x1a0] sm:$0xff] %v2665
        %2730 = vst [vmem:[%s218 + $0x1a8] sm:$0xff] %v2666
        %2731 = vst [vmem:[%s218 + $0x1b0] sm:$0xff] %v2667
        %2732 = vst [vmem:[%s218 + $0x1b8] sm:$0xff] %v2668
        %2733 = vst [vmem:[%s218 + $0x1c0] sm:$0xff] %v2669
        %2734 = vst [vmem:[%s218 + $0x1c8] sm:$0xff] %v2670
        %2735 = vst [vmem:[%s218 + $0x1d0] sm:$0xff] %v2671
        %2736 = vst [vmem:[%s218 + $0x1d8] sm:$0xff] %v2672
        %2737 = vst [vmem:[%s218 + $0x1e0] sm:$0xff] %v2673
        %2738 = vst [vmem:[%s218 + $0x1e8] sm:$0xff] %v2674
        %2739 = vst [vmem:[%s218 + $0x1f0] sm:$0xff] %v2675
        %2740 = vst [vmem:[%s218 + $0x1f8] sm:$0xff] %v2676
        %s2741 = sand.u32 %s137, 1
        %s2742 = scalar_lea.sflag [#allocation3], %s2741
        %s2743 = sand.u32 %s137, 1
        %s2744 = smul.addr %s2743, 512
        %s2745 = scalar_lea.vmem [#allocation2], %s2744
        // Predicated region
        $region41: #{tpu_custom_call.1} parent=39 // pred_check
          %p2746 = pneg %p147
        $region42: #{tpu_custom_call.1} parent=39 // pred_check_branch
          %2748 = sbr.rel (%p2746) target = $region44
        $region43: #{tpu_custom_call.1} parent=39 // pred_region
          %s2749 = smul.u32 32, %s19
          %2751 = vsyncadd %s2742, 0
          %s2752 = smul.addr %s2749, 2
          %s2753 = smul.addr %s2752, 8
          %s2754 = scalar_lea.hbm %s5, %s2753
          %s2755 = sshll.u32 %s2745, 4
          %s2756 = int_to_ptr.vmem [resolvable:$true] %s2755
          %s2757 = sshll.u32 %s2754, 4
          %s2758 = int_to_ptr.hbm [resolvable:$true] %s2757
          %2763 = dma.vmem_to_hbm [thread:$0]  %s2756, 8192, %s2758, %s2742, 256, 256, 16
        $region44: #{tpu_custom_call.1} parent=39 // pred_fallthru
          _
      $region40: #{tpu_custom_call.1} parent=5 // pred_fallthru
        _
      %p2764 = scmp.le.s32.totalorder 2, %s14
      // Predicated region
      $region45: #{tpu_custom_call.1} parent=5 // pred_check
        %p2765 = pneg %p2764
      $region46: #{tpu_custom_call.1} parent=5 // pred_check_branch
        %2767 = sbr.rel (%p2765) target = $region48
      $region47: #{tpu_custom_call.1} parent=5 // pred_region
        %s2768 = ssub.s32 %s14, 2
        // Predicated region
        $region49: #{tpu_custom_call.1} parent=47 // pred_check
          %p2769 = pneg %p153
        $region50: #{tpu_custom_call.1} parent=47 // pred_check_branch
          %2771 = sbr.rel (%p2769) target = $region52
        $region51: #{tpu_custom_call.1} parent=47 // pred_region
          %s2772 = sand.u32 %s138, 1
          %s2773 = scalar_lea.sflag [#allocation3], %s2772
          %s2774 = sand.u32 %s138, 1
          %s2775 = smul.addr %s2774, 512
          %s2776 = scalar_lea.vmem [#allocation2], %s2775
          %2778 = dma.done %s2773, 8192
        $region52: #{tpu_custom_call.1} parent=47 // pred_fallthru
          _
      $region48: #{tpu_custom_call.1} parent=5 // pred_fallthru
        _
    $region6: #{tpu_custom_call.1} parent=1 // loop_footer
      %s18 = sadd.s32 1, %s14
    $region7: #{tpu_custom_call.1} parent=1 // loop_footer_branch
      %13 = sbr.rel target = $region3
    $region8: #{tpu_custom_call.1} parent=1 // loop_exit
      _
    %2779 = vsyncpa [#allocation3], 1
    %s2780 = scalar_lea.sflag [#allocation3], 1
    %2781 = vsyncpa %s2780, 1

</llo_original>
